<compile_context>
chip_gen: v7x
topology: tpu7x:2x2x1
jax: 0.10.0
libtpu: 0.0.40
codegen_flags: <defaults>
</compile_context>

<pallas_src>
import functools

import jax
import jax.numpy as jnp
from jax.experimental import pallas as pl
from jax.experimental.pallas import tpu as pltpu


def _round_up(x, m):
    return ((x + m - 1) // m) * m


def _choose_t_chunk(T, Bp, Hp, storage_itemsize,
                    vmem_budget_bytes=24 * 1024 * 1024):
    """Pick a time-chunk so double-buffered xg + out chunks + weights fit the budget."""
    fixed = (2 * Hp) * (6 * Hp) * storage_itemsize       # block-diagonal W_hh
    fixed += 2 * Hp * 4                                  # n-gate recurrent bias
    fixed += 2 * Bp * 2 * Hp * 4                         # hidden scratch + final-state block
    per_t = 2 * Bp * 6 * Hp * storage_itemsize           # xg chunk, double buffered
    per_t += 2 * 2 * Bp * Hp * 4                         # out_f + out_b chunks, double buffered
    t_chunk = max(1, (vmem_budget_bytes - fixed) // per_t)
    return int(max(1, min(T, t_chunk, 256)))


def _make_bigru_kernel(seq_len, t_chunk, Hp, max_unroll=16):
    """Kernel factory: fused forward+backward GRU recurrence over one time chunk."""

    def kernel(xg_ref, w_ref, bhn_ref, out_f_ref, out_b_ref, hfin_ref, h_ref):
        c = pl.program_id(0)
        B = h_ref.shape[0]

        @pl.when(c == 0)
        def _init():
            h_ref[...] = jnp.zeros_like(h_ref)

        # Hoisted out of the per-timestep loop: weights + pre-broadcast n-gate bias.
        w = w_ref[...]                                               # (2Hp, 6Hp), storage dtype
        bhn = jnp.broadcast_to(bhn_ref[...], (B, 2 * Hp)).astype(jnp.float32)
        h0 = h_ref[...]                                              # (B, 2Hp) f32 carried state

        def step(i, h):
            # Lane layout (all offsets are multiples of Hp, i.e. 128-aligned):
            #   xg / hg columns: [r_f, r_b, z_f, z_b, n_f, n_b]
            #   h columns      : [h_f, h_b]
            hg = jnp.dot(h.astype(w.dtype), w,
                         preferred_element_type=jnp.float32)         # one MXU push per step
            xg = xg_ref[i].astype(jnp.float32)                       # xg already holds b_ih (+ folded b_hr, b_hz)
            rz = jax.nn.sigmoid(xg[:, :4 * Hp] + hg[:, :4 * Hp])     # single sigmoid for r & z, both dirs
            r = rz[:, :2 * Hp]
            z = rz[:, 2 * Hp:]
            n = jnp.tanh(xg[:, 4 * Hp:] + r * (hg[:, 4 * Hp:] + bhn))
            h_new = (1.0 - z) * n + z * h
            # Mask padded tail timesteps so the carried/final state stays exact.
            h_new = jnp.where(c * t_chunk + i < seq_len, h_new, h)
            # Lane-dense, 128-aligned, unmasked stores (separate fwd / bwd outputs).
            out_f_ref[i] = h_new[:, :Hp].astype(out_f_ref.dtype)
            out_b_ref[i] = h_new[:, Hp:].astype(out_b_ref.dtype)
            return h_new

        if t_chunk <= max_unroll:
            h = h0
            for i in range(t_chunk):            # small static chunk -> full unroll
                h = step(i, h)
        else:
            # Non-toy chunk: partially-unrolled fori_loop keeps vreg pressure bounded.
            h = jax.lax.fori_loop(0, t_chunk, step, h0, unroll=8)

        h_ref[...] = h                                               # carry to next chunk

        @pl.when(c == pl.num_programs(0) - 1)
        def _finalize():
            hfin_ref[...] = h.astype(hfin_ref.dtype)

    return kernel


def _bigru_pallas(xg_cat, w_blk, bhn, *, seq_len, t_chunk,
                  out_dtype=jnp.float32, vmem_limit_bytes=32 * 1024 * 1024):
    """xg_cat: (T_pad, Bp, 6*Hp) gate-ordered input projections (both directions).

    Returns (out_f, out_b_rev, hfin):
      out_f     : (T_pad, Bp, Hp) forward hiddens, time-major
      out_b_rev : (T_pad, Bp, Hp) backward hiddens in *reversed* time order
      hfin      : (Bp, 2*Hp) final [forward | backward] hidden states
    """
    T_pad, Bp, G = xg_cat.shape
    Hp = G // 6
    num_chunks = T_pad // t_chunk

    kernel = _make_bigru_kernel(seq_len, t_chunk, Hp)

    grid_spec = pltpu.PrefetchScalarGridSpec(
        num_scalar_prefetch=0,
        grid=(num_chunks,),
        in_specs=[
            pl.BlockSpec((t_chunk, Bp, 6 * Hp), lambda c: (c, 0, 0)),   # xg chunk (pipelined)
            pl.BlockSpec((2 * Hp, 6 * Hp), lambda c: (0, 0)),           # block-diag W_hh (resident)
            pl.BlockSpec((1, 2 * Hp), lambda c: (0, 0)),                # n-gate recurrent bias
        ],
        out_specs=[
            pl.BlockSpec((t_chunk, Bp, Hp), lambda c: (c, 0, 0)),       # out_f chunk
            pl.BlockSpec((t_chunk, Bp, Hp), lambda c: (c, 0, 0)),       # out_b (reversed time) chunk
            pl.BlockSpec((Bp, 2 * Hp), lambda c: (0, 0)),               # final hidden states
        ],
        scratch_shapes=[pltpu.VMEM((Bp, 2 * Hp), jnp.float32)],         # carried hidden state
    )

    out_shapes = (
        jax.ShapeDtypeStruct((T_pad, Bp, Hp), out_dtype),
        jax.ShapeDtypeStruct((T_pad, Bp, Hp), out_dtype),
        jax.ShapeDtypeStruct((Bp, 2 * Hp), out_dtype),
    )

    return pl.pallas_call(
        kernel,
        out_shape=out_shapes,
        grid_spec=grid_spec,
        compiler_params=pltpu.CompilerParams(
            dimension_semantics=("arbitrary",),      # serial recurrence over time chunks
            vmem_limit_bytes=vmem_limit_bytes,
        ),
    )(xg_cat, w_blk, bhn)


def encoder_forward(inputs, embed_matrix, params, *,
                    storage_dtype=jnp.bfloat16, t_chunk=None):
    """Mirror of Encoder.forward: returns (out, h_t).

    out: (B, T, 2H) batch_first, [forward || backward]
    h_t: (2, B, H) final [forward, backward] hidden states
    """
    # inputs_len is computed (but unused) in the reference forward pass.
    _ = jnp.sum(inputs != 0, axis=-1).astype(jnp.float32)

    tokens = jnp.take(embed_matrix, inputs, axis=0)              # (B, T, E) embedding gather (XLA)
    B, T, E = tokens.shape
    H = params["whh_f"].shape[0]
    Hp = _round_up(H, 128)                                       # lane-aligned gate width
    Bp = _round_up(B, 8)                                         # sublane-aligned batch

    x_tbe = jnp.transpose(tokens, (1, 0, 2))                     # (T, B, E) time-major

    # Fused hoisted input projection: ONE (T*B, E) @ (E, 6H) matmul for both directions.
    w_ih = jnp.concatenate([params["wih_f"], params["wih_b"]], axis=1)    # (E, 6H)
    b_ih = jnp.concatenate([params["bih_f"], params["bih_b"]], axis=1)    # (1, 6H)
    xg = (x_tbe.reshape(T * B, E) @ w_ih + b_ih).reshape(T, B, 6 * H)
    xg_f = xg[:, :, :3 * H]
    xg_b = jnp.flip(xg[:, :, 3 * H:], axis=0)    # backward stream, pre-reversed in time

    # Fold the r/z recurrent biases into xg (the n-gate bias must stay inside r*(...)).
    bhh_f, bhh_b = params["bhh_f"], params["bhh_b"]
    gslice = lambda a, g: a[:, :, g * H:(g + 1) * H]
    gates = [
        gslice(xg_f, 0) + bhh_f[:, 0 * H:1 * H],   # r_f
        gslice(xg_b, 0) + bhh_b[:, 0 * H:1 * H],   # r_b
        gslice(xg_f, 1) + bhh_f[:, 1 * H:2 * H],   # z_f
        gslice(xg_b, 1) + bhh_b[:, 1 * H:2 * H],   # z_b
        gslice(xg_f, 2),                           # n_f (recurrent bias kept in-kernel)
        gslice(xg_b, 2),                           # n_b
    ]
    xg_cat = jnp.stack(gates, axis=2)                            # (T, B, 6, H)

    # Chunk sizing + padding (T -> multiple of t_chunk, B -> 8, H -> 128).
    itemsize = jnp.dtype(storage_dtype).itemsize
    if t_chunk is None:
        t_chunk = _choose_t_chunk(T, Bp, Hp, itemsize)
    t_chunk = int(max(1, min(int(t_chunk), T)))
    T_pad = _round_up(T, t_chunk)

    xg_cat = jnp.pad(xg_cat, ((0, T_pad - T), (0, Bp - B), (0, 0), (0, Hp - H)))
    xg_cat = xg_cat.reshape(T_pad, Bp, 6 * Hp).astype(storage_dtype)

    # Block-diagonal recurrent weight: rows [h_f | h_b], cols [r_f, r_b, z_f, z_b, n_f, n_b].
    whh_f, whh_b = params["whh_f"], params["whh_b"]
    w_blk = jnp.zeros((2, Hp, 6, Hp), jnp.float32)
    for g in range(3):                                           # r, z, n
        w_blk = w_blk.at[0, :H, 2 * g + 0, :H].set(whh_f[:, g * H:(g + 1) * H])
        w_blk = w_blk.at[1, :H, 2 * g + 1, :H].set(whh_b[:, g * H:(g + 1) * H])
    w_blk = w_blk.reshape(2 * Hp, 6 * Hp).astype(storage_dtype)

    # n-gate recurrent bias [b_hn_f | b_hn_b] (stays inside r*(...) in the kernel).
    bhn = jnp.zeros((1, 2, Hp), jnp.float32)
    bhn = bhn.at[0, 0, :H].set(params["bhh_f"][0, 2 * H:3 * H])
    bhn = bhn.at[0, 1, :H].set(params["bhh_b"][0, 2 * H:3 * H])
    bhn = bhn.reshape(1, 2 * Hp)

    out_f, out_b_rev, hfin = _bigru_pallas(xg_cat, w_blk, bhn,
                                           seq_len=T, t_chunk=t_chunk)

    # Single XLA fusion: un-pad + un-reverse backward + concat + transpose to batch_first.
    # TODO(synk): if the consumer accepted time-major output the transpose could be skipped.
    out_f = out_f[:T, :B, :H]
    out_b = jnp.flip(out_b_rev[:T, :B, :H], axis=0)
    out = jnp.transpose(jnp.concatenate([out_f, out_b], axis=-1), (1, 0, 2))   # (B, T, 2H)
    h_t = jnp.stack([hfin[:B, :H], hfin[:B, Hp:Hp + H]], axis=0)               # (2, B, H)
    return out, h_t


def _reference_bigru(x_bte, params):
    """Pure-JAX reference (lax.scan) matching PyTorch bidirectional-GRU semantics."""
    H = params["whh_f"].shape[0]

    def cell(h, x, wih, whh, bih, bhh):
        xg = x @ wih + bih[0]
        hg = h @ whh + bhh[0]
        r = jax.nn.sigmoid(xg[:, :H] + hg[:, :H])
        z = jax.nn.sigmoid(xg[:, H:2 * H] + hg[:, H:2 * H])
        n = jnp.tanh(xg[:, 2 * H:] + r * hg[:, 2 * H:])
        h_new = (1.0 - z) * n + z * h
        return h_new, h_new

    B = x_bte.shape[0]
    x_tbe = jnp.transpose(x_bte, (1, 0, 2))
    h0 = jnp.zeros((B, H), jnp.float32)
    hN_f, ys_f = jax.lax.scan(
        lambda h, x: cell(h, x, params["wih_f"], params["whh_f"],
                          params["bih_f"], params["bhh_f"]), h0, x_tbe)
    hN_b, ys_b = jax.lax.scan(
        lambda h, x: cell(h, x, params["wih_b"], params["whh_b"],
                          params["bih_b"], params["bhh_b"]),
        h0, x_tbe, reverse=True)
    out = jnp.transpose(jnp.concatenate([ys_f, ys_b], axis=-1), (1, 0, 2))
    h_t = jnp.stack([hN_f, hN_b], axis=0)
    return out, h_t


if __name__ == "__main__":
    VOCAB, EMBED_DIM, HIDDEN_DIM = 50, 16, 32
    B, T = 2, 10

    key = jax.random.PRNGKey(0)
    k_embed, k_tok, *k_w = jax.random.split(key, 11)

    embed_matrix = jax.random.normal(k_embed, (VOCAB, EMBED_DIM), jnp.float32)

    # Token ids, with trailing padding zeros (like real sequences).
    inputs = jax.random.randint(k_tok, (B, T), 0, VOCAB, dtype=jnp.int32)
    inputs = inputs.at[:, -2:].set(0)

    # GRU parameters (PyTorch layout transposed: weight_ih is (3H, E) -> stored (E, 3H)).
    s = 1.0 / jnp.sqrt(HIDDEN_DIM)
    u = lambda k, shape: jax.random.uniform(k, shape, jnp.float32, -s, s)
    params = {
        "wih_f": u(k_w[0], (EMBED_DIM, 3 * HIDDEN_DIM)),
        "whh_f": u(k_w[1], (HIDDEN_DIM, 3 * HIDDEN_DIM)),
        "bih_f": u(k_w[2], (1, 3 * HIDDEN_DIM)),
        "bhh_f": u(k_w[3], (1, 3 * HIDDEN_DIM)),
        "wih_b": u(k_w[4], (EMBED_DIM, 3 * HIDDEN_DIM)),
        "whh_b": u(k_w[5], (HIDDEN_DIM, 3 * HIDDEN_DIM)),
        "bih_b": u(k_w[6], (1, 3 * HIDDEN_DIM)),
        "bhh_b": u(k_w[7], (1, 3 * HIDDEN_DIM)),
    }

    # Pure-JAX reference.
    tokens = jnp.take(embed_matrix, inputs, axis=0)
    out_ref, h_ref = _reference_bigru(tokens, params)

    # 1) f32 storage, forced multi-chunk grid (exercises chunked VMEM-carried state
    #    + padded-tail masking); tight tolerance.
    fwd_f32 = jax.jit(functools.partial(encoder_forward,
                                        storage_dtype=jnp.float32, t_chunk=4))
    out, h_t = jax.block_until_ready(fwd_f32(inputs, embed_matrix, params))
    assert out.shape == (B, T, 2 * HIDDEN_DIM)
    assert h_t.shape == (2, B, HIDDEN_DIM)
    assert jnp.allclose(out, out_ref, rtol=1e-4, atol=1e-4)
    assert jnp.allclose(h_t, h_ref, rtol=1e-4, atol=1e-4)

    # 2) bf16 storage / bf16 MXU inputs with f32 state (recommended on v6e/v7x);
    #    looser tolerance due to bf16 rounding of xg / W_hh.
    fwd_bf16 = jax.jit(functools.partial(encoder_forward, storage_dtype=jnp.bfloat16))
    out16, h16 = jax.block_until_ready(fwd_bf16(inputs, embed_matrix, params))
    assert out16.shape == (B, T, 2 * HIDDEN_DIM)
    assert h16.shape == (2, B, HIDDEN_DIM)
    assert jnp.allclose(out16, out_ref, rtol=5e-2, atol=5e-2)
    assert jnp.allclose(h16, h_ref, rtol=5e-2, atol=5e-2)

    print("KERNEL_OK")
</pallas_src>

<mosaic_0001>
module attributes {stable_mosaic.version = 11 : i64} {
  func.func @kernel(%arg0: i32, %arg1: memref<4x8x768xf32, #tpu.memory_space<vmem>>, %arg2: memref<256x768xf32, #tpu.memory_space<vmem>>, %arg3: memref<1x256xf32, #tpu.memory_space<vmem>>, %arg4: memref<4x8x128xf32, #tpu.memory_space<vmem>>, %arg5: memref<4x8x128xf32, #tpu.memory_space<vmem>>, %arg6: memref<8x256xf32, #tpu.memory_space<vmem>>, %arg7: memref<8x256xf32, #tpu.memory_space<vmem>>) attributes {dimension_semantics = [#tpu.dimension_semantics<arbitrary>], iteration_bounds = array<i64: 3>, scalar_prefetch = 0 : i64, scratch_operands = 1 : i64, tpu.core_type = #tpu.core_type<tc>, window_params = [{transform_indices = @transform_0, window_bounds = array<i64: 4, 8, 768>}, {pipeline_mode = #tpu.pipeline_mode<synchronous>, transform_indices = @transform_1, window_bounds = array<i64: 256, 768>}, {pipeline_mode = #tpu.pipeline_mode<synchronous>, transform_indices = @transform_2, window_bounds = array<i64: 1, 256>}, {transform_indices = @transform_3, window_bounds = array<i64: 4, 8, 128>}, {transform_indices = @transform_4, window_bounds = array<i64: 4, 8, 128>}, {pipeline_mode = #tpu.pipeline_mode<synchronous>, transform_indices = @transform_5, window_bounds = array<i64: 8, 256>}]} {
    %c0_i32 = arith.constant 0 : i32
    %0 = arith.cmpi eq, %arg0, %c0_i32 : i32
    %1 = arith.extui %0 : i1 to i32
    %c0_i32_0 = arith.constant 0 : i32
    %2 = arith.cmpi ne, %1, %c0_i32_0 : i32
    scf.if %2 {
      %cst_61 = arith.constant 0.000000e+00 : f32
      %156 = vector.broadcast %cst_61 : f32 to vector<8x256xf32>
      %c0_62 = arith.constant 0 : index
      %c0_63 = arith.constant 0 : index
      %157 = vector.load %arg7[%c0_62, %c0_63] : memref<8x256xf32, #tpu.memory_space<vmem>>, vector<8x256xf32>
      tpu.vector_store %arg7[%c0_62, %c0_63], %156 {strides = array<i32>} : memref<8x256xf32, #tpu.memory_space<vmem>>, vector<8x256xf32>,
    } else {
    }
    %c0 = arith.constant 0 : index
    %c0_1 = arith.constant 0 : index
    %3 = vector.load %arg2[%c0, %c0_1] : memref<256x768xf32, #tpu.memory_space<vmem>>, vector<256x768xf32>
    %c0_2 = arith.constant 0 : index
    %c0_3 = arith.constant 0 : index
    %4 = vector.load %arg3[%c0_2, %c0_3] : memref<1x256xf32, #tpu.memory_space<vmem>>, vector<1x256xf32>
    %5 = vector.shape_cast %4 : vector<1x256xf32> to vector<1x256xf32>
    %6 = vector.broadcast %5 : vector<1x256xf32> to vector<8x256xf32>
    %c0_4 = arith.constant 0 : index
    %c0_5 = arith.constant 0 : index
    %7 = vector.load %arg7[%c0_4, %c0_5] : memref<8x256xf32, #tpu.memory_space<vmem>>, vector<8x256xf32>
    %cst = arith.constant dense<0.000000e+00> : vector<8x768xf32>
    %8 = tpu.matmul %7, %3, %cst {dimension_numbers = #tpu.dot_dimension_numbers<[1], [0], [0], [1], [0, 0, 1, 1], [], []>} : vector<8x256xf32>, vector<256x768xf32>, vector<8x768xf32> -> vector<8x768xf32>
    %c0_6 = arith.constant 0 : index
    %c0_7 = arith.constant 0 : index
    %c0_8 = arith.constant 0 : index
    %9 = vector.load %arg1[%c0_6, %c0_7, %c0_8] : memref<4x8x768xf32, #tpu.memory_space<vmem>>, vector<1x8x768xf32>
    %10 = vector.shape_cast %9 : vector<1x8x768xf32> to vector<8x768xf32>
    %11 = vector.extract_strided_slice %10 {offsets = [0, 0], sizes = [8, 512], strides = [1, 1]} : vector<8x768xf32> to vector<8x512xf32>
    %12 = vector.extract_strided_slice %8 {offsets = [0, 0], sizes = [8, 512], strides = [1, 1]} : vector<8x768xf32> to vector<8x512xf32>
    %13 = arith.addf %11, %12 : vector<8x512xf32>
    %14 = arith.negf %13 : vector<8x512xf32>
    %15 = math.exp %14 : vector<8x512xf32>
    %cst_9 = arith.constant 1.000000e+00 : f32
    %16 = vector.broadcast %cst_9 : f32 to vector<8x512xf32>
    %17 = arith.addf %16, %15 : vector<8x512xf32>
    %18 = arith.divf %16, %17 : vector<8x512xf32>
    %19 = vector.extract_strided_slice %18 {offsets = [0, 0], sizes = [8, 256], strides = [1, 1]} : vector<8x512xf32> to vector<8x256xf32>
    %20 = vector.extract_strided_slice %18 {offsets = [0, 256], sizes = [8, 256], strides = [1, 1]} : vector<8x512xf32> to vector<8x256xf32>
    %21 = vector.extract_strided_slice %10 {offsets = [0, 512], sizes = [8, 256], strides = [1, 1]} : vector<8x768xf32> to vector<8x256xf32>
    %22 = vector.extract_strided_slice %8 {offsets = [0, 512], sizes = [8, 256], strides = [1, 1]} : vector<8x768xf32> to vector<8x256xf32>
    %23 = arith.addf %22, %6 : vector<8x256xf32>
    %24 = arith.mulf %19, %23 : vector<8x256xf32>
    %25 = arith.addf %21, %24 : vector<8x256xf32>
    %26 = math.tanh %25 : vector<8x256xf32>
    %cst_10 = arith.constant 1.000000e+00 : f32
    %27 = vector.broadcast %cst_10 : f32 to vector<8x256xf32>
    %28 = arith.subf %27, %20 : vector<8x256xf32>
    %29 = arith.mulf %28, %26 : vector<8x256xf32>
    %30 = arith.mulf %20, %7 : vector<8x256xf32>
    %31 = arith.addf %29, %30 : vector<8x256xf32>
    %c4_i32 = arith.constant 4 : i32
    %32 = arith.muli %arg0, %c4_i32 : i32
    %c0_i32_11 = arith.constant 0 : i32
    %33 = arith.addi %32, %c0_i32_11 : i32
    %c10_i32 = arith.constant 10 : i32
    %34 = arith.cmpi slt, %33, %c10_i32 : i32
    %35 = arith.select %34, %31, %7 : vector<8x256xf32>
    %36 = vector.extract_strided_slice %35 {offsets = [0, 0], sizes = [8, 128], strides = [1, 1]} : vector<8x256xf32> to vector<8x128xf32>
    %c0_12 = arith.constant 0 : index
    %c0_13 = arith.constant 0 : index
    %c0_14 = arith.constant 0 : index
    %37 = vector.load %arg4[%c0_12, %c0_13, %c0_14] : memref<4x8x128xf32, #tpu.memory_space<vmem>>, vector<1x8x128xf32>
    %38 = vector.shape_cast %37 : vector<1x8x128xf32> to vector<8x128xf32>
    %39 = vector.shape_cast %36 : vector<8x128xf32> to vector<1x8x128xf32>
    tpu.vector_store %arg4[%c0_12, %c0_13, %c0_14], %39 {strides = array<i32>} : memref<4x8x128xf32, #tpu.memory_space<vmem>>, vector<1x8x128xf32>,
    %40 = vector.extract_strided_slice %35 {offsets = [0, 128], sizes = [8, 128], strides = [1, 1]} : vector<8x256xf32> to vector<8x128xf32>
    %c0_15 = arith.constant 0 : index
    %c0_16 = arith.constant 0 : index
    %c0_17 = arith.constant 0 : index
    %41 = vector.load %arg5[%c0_15, %c0_16, %c0_17] : memref<4x8x128xf32, #tpu.memory_space<vmem>>, vector<1x8x128xf32>
    %42 = vector.shape_cast %41 : vector<1x8x128xf32> to vector<8x128xf32>
    %43 = vector.shape_cast %40 : vector<8x128xf32> to vector<1x8x128xf32>
    tpu.vector_store %arg5[%c0_15, %c0_16, %c0_17], %43 {strides = array<i32>} : memref<4x8x128xf32, #tpu.memory_space<vmem>>, vector<1x8x128xf32>,
    %cst_18 = arith.constant dense<0.000000e+00> : vector<8x768xf32>
    %44 = tpu.matmul %35, %3, %cst_18 {dimension_numbers = #tpu.dot_dimension_numbers<[1], [0], [0], [1], [0, 0, 1, 1], [], []>} : vector<8x256xf32>, vector<256x768xf32>, vector<8x768xf32> -> vector<8x768xf32>
    %c1 = arith.constant 1 : index
    %c0_19 = arith.constant 0 : index
    %c0_20 = arith.constant 0 : index
    %45 = vector.load %arg1[%c1, %c0_19, %c0_20] : memref<4x8x768xf32, #tpu.memory_space<vmem>>, vector<1x8x768xf32>
    %46 = vector.shape_cast %45 : vector<1x8x768xf32> to vector<8x768xf32>
    %47 = vector.extract_strided_slice %46 {offsets = [0, 0], sizes = [8, 512], strides = [1, 1]} : vector<8x768xf32> to vector<8x512xf32>
    %48 = vector.extract_strided_slice %44 {offsets = [0, 0], sizes = [8, 512], strides = [1, 1]} : vector<8x768xf32> to vector<8x512xf32>
    %49 = arith.addf %47, %48 : vector<8x512xf32>
    %50 = arith.negf %49 : vector<8x512xf32>
    %51 = math.exp %50 : vector<8x512xf32>
    %cst_21 = arith.constant 1.000000e+00 : f32
    %52 = vector.broadcast %cst_21 : f32 to vector<8x512xf32>
    %53 = arith.addf %52, %51 : vector<8x512xf32>
    %54 = arith.divf %52, %53 : vector<8x512xf32>
    %55 = vector.extract_strided_slice %54 {offsets = [0, 0], sizes = [8, 256], strides = [1, 1]} : vector<8x512xf32> to vector<8x256xf32>
    %56 = vector.extract_strided_slice %54 {offsets = [0, 256], sizes = [8, 256], strides = [1, 1]} : vector<8x512xf32> to vector<8x256xf32>
    %57 = vector.extract_strided_slice %46 {offsets = [0, 512], sizes = [8, 256], strides = [1, 1]} : vector<8x768xf32> to vector<8x256xf32>
    %58 = vector.extract_strided_slice %44 {offsets = [0, 512], sizes = [8, 256], strides = [1, 1]} : vector<8x768xf32> to vector<8x256xf32>
    %59 = arith.addf %58, %6 : vector<8x256xf32>
    %60 = arith.mulf %55, %59 : vector<8x256xf32>
    %61 = arith.addf %57, %60 : vector<8x256xf32>
    %62 = math.tanh %61 : vector<8x256xf32>
    %cst_22 = arith.constant 1.000000e+00 : f32
    %63 = vector.broadcast %cst_22 : f32 to vector<8x256xf32>
    %64 = arith.subf %63, %56 : vector<8x256xf32>
    %65 = arith.mulf %64, %62 : vector<8x256xf32>
    %66 = arith.mulf %56, %35 : vector<8x256xf32>
    %67 = arith.addf %65, %66 : vector<8x256xf32>
    %c4_i32_23 = arith.constant 4 : i32
    %68 = arith.muli %arg0, %c4_i32_23 : i32
    %c1_i32 = arith.constant 1 : i32
    %69 = arith.addi %68, %c1_i32 : i32
    %c10_i32_24 = arith.constant 10 : i32
    %70 = arith.cmpi slt, %69, %c10_i32_24 : i32
    %71 = arith.select %70, %67, %35 : vector<8x256xf32>
    %72 = vector.extract_strided_slice %71 {offsets = [0, 0], sizes = [8, 128], strides = [1, 1]} : vector<8x256xf32> to vector<8x128xf32>
    %c1_25 = arith.constant 1 : index
    %c0_26 = arith.constant 0 : index
    %c0_27 = arith.constant 0 : index
    %73 = vector.load %arg4[%c1_25, %c0_26, %c0_27] : memref<4x8x128xf32, #tpu.memory_space<vmem>>, vector<1x8x128xf32>
    %74 = vector.shape_cast %73 : vector<1x8x128xf32> to vector<8x128xf32>
    %75 = vector.shape_cast %72 : vector<8x128xf32> to vector<1x8x128xf32>
    tpu.vector_store %arg4[%c1_25, %c0_26, %c0_27], %75 {strides = array<i32>} : memref<4x8x128xf32, #tpu.memory_space<vmem>>, vector<1x8x128xf32>,
    %76 = vector.extract_strided_slice %71 {offsets = [0, 128], sizes = [8, 128], strides = [1, 1]} : vector<8x256xf32> to vector<8x128xf32>
    %c1_28 = arith.constant 1 : index
    %c0_29 = arith.constant 0 : index
    %c0_30 = arith.constant 0 : index
    %77 = vector.load %arg5[%c1_28, %c0_29, %c0_30] : memref<4x8x128xf32, #tpu.memory_space<vmem>>, vector<1x8x128xf32>
    %78 = vector.shape_cast %77 : vector<1x8x128xf32> to vector<8x128xf32>
    %79 = vector.shape_cast %76 : vector<8x128xf32> to vector<1x8x128xf32>
    tpu.vector_store %arg5[%c1_28, %c0_29, %c0_30], %79 {strides = array<i32>} : memref<4x8x128xf32, #tpu.memory_space<vmem>>, vector<1x8x128xf32>,
    %cst_31 = arith.constant dense<0.000000e+00> : vector<8x768xf32>
    %80 = tpu.matmul %71, %3, %cst_31 {dimension_numbers = #tpu.dot_dimension_numbers<[1], [0], [0], [1], [0, 0, 1, 1], [], []>} : vector<8x256xf32>, vector<256x768xf32>, vector<8x768xf32> -> vector<8x768xf32>
    %c2 = arith.constant 2 : index
    %c0_32 = arith.constant 0 : index
    %c0_33 = arith.constant 0 : index
    %81 = vector.load %arg1[%c2, %c0_32, %c0_33] : memref<4x8x768xf32, #tpu.memory_space<vmem>>, vector<1x8x768xf32>
    %82 = vector.shape_cast %81 : vector<1x8x768xf32> to vector<8x768xf32>
    %83 = vector.extract_strided_slice %82 {offsets = [0, 0], sizes = [8, 512], strides = [1, 1]} : vector<8x768xf32> to vector<8x512xf32>
    %84 = vector.extract_strided_slice %80 {offsets = [0, 0], sizes = [8, 512], strides = [1, 1]} : vector<8x768xf32> to vector<8x512xf32>
    %85 = arith.addf %83, %84 : vector<8x512xf32>
    %86 = arith.negf %85 : vector<8x512xf32>
    %87 = math.exp %86 : vector<8x512xf32>
    %cst_34 = arith.constant 1.000000e+00 : f32
    %88 = vector.broadcast %cst_34 : f32 to vector<8x512xf32>
    %89 = arith.addf %88, %87 : vector<8x512xf32>
    %90 = arith.divf %88, %89 : vector<8x512xf32>
    %91 = vector.extract_strided_slice %90 {offsets = [0, 0], sizes = [8, 256], strides = [1, 1]} : vector<8x512xf32> to vector<8x256xf32>
    %92 = vector.extract_strided_slice %90 {offsets = [0, 256], sizes = [8, 256], strides = [1, 1]} : vector<8x512xf32> to vector<8x256xf32>
    %93 = vector.extract_strided_slice %82 {offsets = [0, 512], sizes = [8, 256], strides = [1, 1]} : vector<8x768xf32> to vector<8x256xf32>
    %94 = vector.extract_strided_slice %80 {offsets = [0, 512], sizes = [8, 256], strides = [1, 1]} : vector<8x768xf32> to vector<8x256xf32>
    %95 = arith.addf %94, %6 : vector<8x256xf32>
    %96 = arith.mulf %91, %95 : vector<8x256xf32>
    %97 = arith.addf %93, %96 : vector<8x256xf32>
    %98 = math.tanh %97 : vector<8x256xf32>
    %cst_35 = arith.constant 1.000000e+00 : f32
    %99 = vector.broadcast %cst_35 : f32 to vector<8x256xf32>
    %100 = arith.subf %99, %92 : vector<8x256xf32>
    %101 = arith.mulf %100, %98 : vector<8x256xf32>
    %102 = arith.mulf %92, %71 : vector<8x256xf32>
    %103 = arith.addf %101, %102 : vector<8x256xf32>
    %c4_i32_36 = arith.constant 4 : i32
    %104 = arith.muli %arg0, %c4_i32_36 : i32
    %c2_i32 = arith.constant 2 : i32
    %105 = arith.addi %104, %c2_i32 : i32
    %c10_i32_37 = arith.constant 10 : i32
    %106 = arith.cmpi slt, %105, %c10_i32_37 : i32
    %107 = arith.select %106, %103, %71 : vector<8x256xf32>
    %108 = vector.extract_strided_slice %107 {offsets = [0, 0], sizes = [8, 128], strides = [1, 1]} : vector<8x256xf32> to vector<8x128xf32>
    %c2_38 = arith.constant 2 : index
    %c0_39 = arith.constant 0 : index
    %c0_40 = arith.constant 0 : index
    %109 = vector.load %arg4[%c2_38, %c0_39, %c0_40] : memref<4x8x128xf32, #tpu.memory_space<vmem>>, vector<1x8x128xf32>
    %110 = vector.shape_cast %109 : vector<1x8x128xf32> to vector<8x128xf32>
    %111 = vector.shape_cast %108 : vector<8x128xf32> to vector<1x8x128xf32>
    tpu.vector_store %arg4[%c2_38, %c0_39, %c0_40], %111 {strides = array<i32>} : memref<4x8x128xf32, #tpu.memory_space<vmem>>, vector<1x8x128xf32>,
    %112 = vector.extract_strided_slice %107 {offsets = [0, 128], sizes = [8, 128], strides = [1, 1]} : vector<8x256xf32> to vector<8x128xf32>
    %c2_41 = arith.constant 2 : index
    %c0_42 = arith.constant 0 : index
    %c0_43 = arith.constant 0 : index
    %113 = vector.load %arg5[%c2_41, %c0_42, %c0_43] : memref<4x8x128xf32, #tpu.memory_space<vmem>>, vector<1x8x128xf32>
    %114 = vector.shape_cast %113 : vector<1x8x128xf32> to vector<8x128xf32>
    %115 = vector.shape_cast %112 : vector<8x128xf32> to vector<1x8x128xf32>
    tpu.vector_store %arg5[%c2_41, %c0_42, %c0_43], %115 {strides = array<i32>} : memref<4x8x128xf32, #tpu.memory_space<vmem>>, vector<1x8x128xf32>,
    %cst_44 = arith.constant dense<0.000000e+00> : vector<8x768xf32>
    %116 = tpu.matmul %107, %3, %cst_44 {dimension_numbers = #tpu.dot_dimension_numbers<[1], [0], [0], [1], [0, 0, 1, 1], [], []>} : vector<8x256xf32>, vector<256x768xf32>, vector<8x768xf32> -> vector<8x768xf32>
    %c3 = arith.constant 3 : index
    %c0_45 = arith.constant 0 : index
    %c0_46 = arith.constant 0 : index
    %117 = vector.load %arg1[%c3, %c0_45, %c0_46] : memref<4x8x768xf32, #tpu.memory_space<vmem>>, vector<1x8x768xf32>
    %118 = vector.shape_cast %117 : vector<1x8x768xf32> to vector<8x768xf32>
    %119 = vector.extract_strided_slice %118 {offsets = [0, 0], sizes = [8, 512], strides = [1, 1]} : vector<8x768xf32> to vector<8x512xf32>
    %120 = vector.extract_strided_slice %116 {offsets = [0, 0], sizes = [8, 512], strides = [1, 1]} : vector<8x768xf32> to vector<8x512xf32>
    %121 = arith.addf %119, %120 : vector<8x512xf32>
    %122 = arith.negf %121 : vector<8x512xf32>
    %123 = math.exp %122 : vector<8x512xf32>
    %cst_47 = arith.constant 1.000000e+00 : f32
    %124 = vector.broadcast %cst_47 : f32 to vector<8x512xf32>
    %125 = arith.addf %124, %123 : vector<8x512xf32>
    %126 = arith.divf %124, %125 : vector<8x512xf32>
    %127 = vector.extract_strided_slice %126 {offsets = [0, 0], sizes = [8, 256], strides = [1, 1]} : vector<8x512xf32> to vector<8x256xf32>
    %128 = vector.extract_strided_slice %126 {offsets = [0, 256], sizes = [8, 256], strides = [1, 1]} : vector<8x512xf32> to vector<8x256xf32>
    %129 = vector.extract_strided_slice %118 {offsets = [0, 512], sizes = [8, 256], strides = [1, 1]} : vector<8x768xf32> to vector<8x256xf32>
    %130 = vector.extract_strided_slice %116 {offsets = [0, 512], sizes = [8, 256], strides = [1, 1]} : vector<8x768xf32> to vector<8x256xf32>
    %131 = arith.addf %130, %6 : vector<8x256xf32>
    %132 = arith.mulf %127, %131 : vector<8x256xf32>
    %133 = arith.addf %129, %132 : vector<8x256xf32>
    %134 = math.tanh %133 : vector<8x256xf32>
    %cst_48 = arith.constant 1.000000e+00 : f32
    %135 = vector.broadcast %cst_48 : f32 to vector<8x256xf32>
    %136 = arith.subf %135, %128 : vector<8x256xf32>
    %137 = arith.mulf %136, %134 : vector<8x256xf32>
    %138 = arith.mulf %128, %107 : vector<8x256xf32>
    %139 = arith.addf %137, %138 : vector<8x256xf32>
    %c4_i32_49 = arith.constant 4 : i32
    %140 = arith.muli %arg0, %c4_i32_49 : i32
    %c3_i32 = arith.constant 3 : i32
    %141 = arith.addi %140, %c3_i32 : i32
    %c10_i32_50 = arith.constant 10 : i32
    %142 = arith.cmpi slt, %141, %c10_i32_50 : i32
    %143 = arith.select %142, %139, %107 : vector<8x256xf32>
    %144 = vector.extract_strided_slice %143 {offsets = [0, 0], sizes = [8, 128], strides = [1, 1]} : vector<8x256xf32> to vector<8x128xf32>
    %c3_51 = arith.constant 3 : index
    %c0_52 = arith.constant 0 : index
    %c0_53 = arith.constant 0 : index
    %145 = vector.load %arg4[%c3_51, %c0_52, %c0_53] : memref<4x8x128xf32, #tpu.memory_space<vmem>>, vector<1x8x128xf32>
    %146 = vector.shape_cast %145 : vector<1x8x128xf32> to vector<8x128xf32>
    %147 = vector.shape_cast %144 : vector<8x128xf32> to vector<1x8x128xf32>
    tpu.vector_store %arg4[%c3_51, %c0_52, %c0_53], %147 {strides = array<i32>} : memref<4x8x128xf32, #tpu.memory_space<vmem>>, vector<1x8x128xf32>,
    %148 = vector.extract_strided_slice %143 {offsets = [0, 128], sizes = [8, 128], strides = [1, 1]} : vector<8x256xf32> to vector<8x128xf32>
    %c3_54 = arith.constant 3 : index
    %c0_55 = arith.constant 0 : index
    %c0_56 = arith.constant 0 : index
    %149 = vector.load %arg5[%c3_54, %c0_55, %c0_56] : memref<4x8x128xf32, #tpu.memory_space<vmem>>, vector<1x8x128xf32>
    %150 = vector.shape_cast %149 : vector<1x8x128xf32> to vector<8x128xf32>
    %151 = vector.shape_cast %148 : vector<8x128xf32> to vector<1x8x128xf32>
    tpu.vector_store %arg5[%c3_54, %c0_55, %c0_56], %151 {strides = array<i32>} : memref<4x8x128xf32, #tpu.memory_space<vmem>>, vector<1x8x128xf32>,
    %c0_57 = arith.constant 0 : index
    %c0_58 = arith.constant 0 : index
    %152 = vector.load %arg7[%c0_57, %c0_58] : memref<8x256xf32, #tpu.memory_space<vmem>>, vector<8x256xf32>
    tpu.vector_store %arg7[%c0_57, %c0_58], %143 {strides = array<i32>} : memref<8x256xf32, #tpu.memory_space<vmem>>, vector<8x256xf32>,
    %c2_i32_59 = arith.constant 2 : i32
    %153 = arith.cmpi eq, %arg0, %c2_i32_59 : i32
    %154 = arith.extui %153 : i1 to i32
    %c0_i32_60 = arith.constant 0 : i32
    %155 = arith.cmpi ne, %154, %c0_i32_60 : i32
    scf.if %155 {
      %c0_61 = arith.constant 0 : index
      %c0_62 = arith.constant 0 : index
      %156 = vector.load %arg6[%c0_61, %c0_62] : memref<8x256xf32, #tpu.memory_space<vmem>>, vector<8x256xf32>
      tpu.vector_store %arg6[%c0_61, %c0_62], %143 {strides = array<i32>} : memref<8x256xf32, #tpu.memory_space<vmem>>, vector<8x256xf32>,
    } else {
    }
    return
  }
  func.func @transform_0(%arg0: i32) -> (i32, i32, i32) {
    %c0_i32 = arith.constant 0 : i32
    %c0_i32_0 = arith.constant 0 : i32
    %c0_i32_1 = arith.constant 0 : i32
    return %arg0, %c0_i32, %c0_i32_0 : i32, i32, i32
  }
  func.func @transform_1(%arg0: i32) -> (i32, i32) {
    %c0_i32 = arith.constant 0 : i32
    %c0_i32_0 = arith.constant 0 : i32
    %c0_i32_1 = arith.constant 0 : i32
    return %c0_i32, %c0_i32_0 : i32, i32
  }
  func.func @transform_2(%arg0: i32) -> (i32, i32) {
    %c0_i32 = arith.constant 0 : i32
    %c0_i32_0 = arith.constant 0 : i32
    %c0_i32_1 = arith.constant 0 : i32
    return %c0_i32, %c0_i32_0 : i32, i32
  }
  func.func @transform_3(%arg0: i32) -> (i32, i32, i32) {
    %c0_i32 = arith.constant 0 : i32
    %c0_i32_0 = arith.constant 0 : i32
    %c0_i32_1 = arith.constant 0 : i32
    return %arg0, %c0_i32, %c0_i32_0 : i32, i32, i32
  }
  func.func @transform_4(%arg0: i32) -> (i32, i32, i32) {
    %c0_i32 = arith.constant 0 : i32
    %c0_i32_0 = arith.constant 0 : i32
    %c0_i32_1 = arith.constant 0 : i32
    return %arg0, %c0_i32, %c0_i32_0 : i32, i32, i32
  }
  func.func @transform_5(%arg0: i32) -> (i32, i32) {
    %c0_i32 = arith.constant 0 : i32
    %c0_i32_0 = arith.constant 0 : i32
    %c0_i32_1 = arith.constant 0 : i32
    return %c0_i32, %c0_i32_0 : i32, i32
  }
}

</mosaic_0001>

<llo_original>
// kernel: encoder_forward.1
$region0: #{encoder_forward.1}
  #allocation0 [shape = 'u32[]', space=smem, size = 0x4, offset = 0x4, fixed_abs, tag = 'smem constant byte address 0x4 - core index']
  #allocation1 [shape = 'u32[144,128]{1,0:T(1,128)}', space=vmem, size = 0x12000, scoped, tag = 'internal scratch']
  #allocation2 [shape = 'f32[8,256]{1,0:T(8,128)}', space=vmem, size = 0x2000, scoped, tag = 'scratch operand']
  %s0 = inlined_call_operand.vmem [shape: f32[12,8,768], index: 0, kind: input, shape index: {}]
  %s1 = inlined_call_operand.vmem [shape: f32[256,768], index: 1, kind: input, shape index: {}]
  %s2 = inlined_call_operand.vmem [shape: f32[1,256], index: 2, kind: input, shape index: {}]
  %s3 = inlined_call_operand.vmem [shape: f32[12,8,128], index: 3, kind: output, shape index: {0}]
  %s4 = inlined_call_operand.vmem [shape: f32[12,8,128], index: 4, kind: output, shape index: {1}]
  %s5 = inlined_call_operand.vmem [shape: f32[8,256], index: 5, kind: output, shape index: {2}]
  %6 = xla_tuple %s3, %s4, %s5
  %s7 = sld [smem:[#allocation0]]
  $region69: #{encoder_forward.1} parent=0
    _
  %s9 = ssub.s32 1, %s7
  %s10 = scalar_select 0, %s9, %s7
  loop: start=0, step=1, limit=5
  $region2: #{encoder_forward.1} parent=0 // loop_pre_header
    _
  $region3: #{encoder_forward.1} parent=0 // loop_header
    %s12 = sphi 0, %s16
    %p13 = scmp.ge.s32.totalorder %s12, 5
    %s22 = sphi 0, %s24
    %s25 = sphi 0, %s22
    %s26 = sphi 0, %s25
    %s42 = sphi 0, %s26
    %s46 = sphi 0, %s46
    %s48 = sphi 0, %s46
    %s49 = sphi 0, %s48
    %s63 = sphi 0, %s49
    %s67 = sphi 0, %s67
    %s69 = sphi 0, %s67
    %s70 = sphi 0, %s69
    %s84 = sphi 0, %s70
    %s90 = sphi 0, %s92
    %s93 = sphi 0, %s90
    %s94 = sphi 0, %s93
    %s110 = sphi 0, %s94
    %s116 = sphi 0, %s118
    %s119 = sphi 0, %s116
    %s120 = sphi 0, %s119
    %s136 = sphi 0, %s120
    %s140 = sphi 0, %s140
    %s142 = sphi 0, %s140
    %s143 = sphi 0, %s142
    %s157 = sphi 0, %s143
  $region4: #{encoder_forward.1} parent=0 // loop_header_branch
    %15 = sbr.rel (%p13) target = $region8
  $region5: #{encoder_forward.1} parent=0 // loop_body
    %s17 = ssub.s32 %s12, 1
    %s18 = ssub.s32 %s12, 2
    %s19 = sadd.s32 %s12, 1
    %s20 = ssub.s32 %s12, %s19
    %p21 = scmp.eq.s32.totalorder %s20, 0
    %s23 = sadd.s32 %s22, 1
    %s24 = scalar_select %p21, %s22, %s23
    %p27 = pneg %p21
    %p28 = scmp.eq.s32.totalorder %s12, 2
    %p29 = por %p27, %p28
    %p30 = scmp.ne.s32.totalorder %s22, %s25
    %p31 = scmp.eq.s32.totalorder %s12, 0
    %p32 = por %p30, %p31
    %p33 = scmp.ne.s32.totalorder %s22, %s25
    %p34 = scmp.eq.s32.totalorder %s17, 2
    %p35 = por %p33, %p34
    %p36 = scmp.ne.s32.totalorder %s25, %s26
    %p37 = scmp.eq.s32.totalorder %s17, 0
    %p38 = por %p36, %p37
    %p39 = scmp.ne.s32.totalorder %s25, %s26
    %p40 = scmp.eq.s32.totalorder %s18, 2
    %p41 = por %p39, %p40
    %p43 = scmp.ne.s32.totalorder %s26, %s42
    %p44 = scmp.eq.s32.totalorder %s18, 0
    %p45 = por %p43, %p44
    %s47 = sadd.s32 %s46, 1
    %p50 = scmp.eq.s32.totalorder %s12, 2
    %p51 = scmp.ne.s32.totalorder %s46, %s48
    %p52 = scmp.eq.s32.totalorder %s12, 0
    %p53 = por %p51, %p52
    %p54 = scmp.ne.s32.totalorder %s46, %s48
    %p55 = scmp.eq.s32.totalorder %s17, 2
    %p56 = por %p54, %p55
    %p57 = scmp.ne.s32.totalorder %s48, %s49
    %p58 = scmp.eq.s32.totalorder %s17, 0
    %p59 = por %p57, %p58
    %p60 = scmp.ne.s32.totalorder %s48, %s49
    %p61 = scmp.eq.s32.totalorder %s18, 2
    %p62 = por %p60, %p61
    %p64 = scmp.ne.s32.totalorder %s49, %s63
    %p65 = scmp.eq.s32.totalorder %s18, 0
    %p66 = por %p64, %p65
    %s68 = sadd.s32 %s67, 1
    %p71 = scmp.eq.s32.totalorder %s12, 2
    %p72 = scmp.ne.s32.totalorder %s67, %s69
    %p73 = scmp.eq.s32.totalorder %s12, 0
    %p74 = por %p72, %p73
    %p75 = scmp.ne.s32.totalorder %s67, %s69
    %p76 = scmp.eq.s32.totalorder %s17, 2
    %p77 = por %p75, %p76
    %p78 = scmp.ne.s32.totalorder %s69, %s70
    %p79 = scmp.eq.s32.totalorder %s17, 0
    %p80 = por %p78, %p79
    %p81 = scmp.ne.s32.totalorder %s69, %s70
    %p82 = scmp.eq.s32.totalorder %s18, 2
    %p83 = por %p81, %p82
    %p85 = scmp.ne.s32.totalorder %s70, %s84
    %p86 = scmp.eq.s32.totalorder %s18, 0
    %p87 = por %p85, %p86
    %s88 = ssub.s32 %s12, %s19
    %p89 = scmp.eq.s32.totalorder %s88, 0
    %s91 = sadd.s32 %s90, 1
    %s92 = scalar_select %p89, %s90, %s91
    %p95 = pneg %p89
    %p96 = scmp.eq.s32.totalorder %s12, 2
    %p97 = por %p95, %p96
    %p98 = scmp.ne.s32.totalorder %s90, %s93
    %p99 = scmp.eq.s32.totalorder %s12, 0
    %p100 = por %p98, %p99
    %p101 = scmp.ne.s32.totalorder %s90, %s93
    %p102 = scmp.eq.s32.totalorder %s17, 2
    %p103 = por %p101, %p102
    %p104 = scmp.ne.s32.totalorder %s93, %s94
    %p105 = scmp.eq.s32.totalorder %s17, 0
    %p106 = por %p104, %p105
    %p107 = scmp.ne.s32.totalorder %s93, %s94
    %p108 = scmp.eq.s32.totalorder %s18, 2
    %p109 = por %p107, %p108
    %p111 = scmp.ne.s32.totalorder %s94, %s110
    %p112 = scmp.eq.s32.totalorder %s18, 0
    %p113 = por %p111, %p112
    %s114 = ssub.s32 %s12, %s19
    %p115 = scmp.eq.s32.totalorder %s114, 0
    %s117 = sadd.s32 %s116, 1
    %s118 = scalar_select %p115, %s116, %s117
    %p121 = pneg %p115
    %p122 = scmp.eq.s32.totalorder %s12, 2
    %p123 = por %p121, %p122
    %p124 = scmp.ne.s32.totalorder %s116, %s119
    %p125 = scmp.eq.s32.totalorder %s12, 0
    %p126 = por %p124, %p125
    %p127 = scmp.ne.s32.totalorder %s116, %s119
    %p128 = scmp.eq.s32.totalorder %s17, 2
    %p129 = por %p127, %p128
    %p130 = scmp.ne.s32.totalorder %s119, %s120
    %p131 = scmp.eq.s32.totalorder %s17, 0
    %p132 = por %p130, %p131
    %p133 = scmp.ne.s32.totalorder %s119, %s120
    %p134 = scmp.eq.s32.totalorder %s18, 2
    %p135 = por %p133, %p134
    %p137 = scmp.ne.s32.totalorder %s120, %s136
    %p138 = scmp.eq.s32.totalorder %s18, 0
    %p139 = por %p137, %p138
    %s141 = sadd.s32 %s140, 1
    %p144 = scmp.eq.s32.totalorder %s12, 2
    %p145 = scmp.ne.s32.totalorder %s140, %s142
    %p146 = scmp.eq.s32.totalorder %s12, 0
    %p147 = por %p145, %p146
    %p148 = scmp.ne.s32.totalorder %s140, %s142
    %p149 = scmp.eq.s32.totalorder %s17, 2
    %p150 = por %p148, %p149
    %p151 = scmp.ne.s32.totalorder %s142, %s143
    %p152 = scmp.eq.s32.totalorder %s17, 0
    %p153 = por %p151, %p152
    %p154 = scmp.ne.s32.totalorder %s142, %s143
    %p155 = scmp.eq.s32.totalorder %s18, 2
    %p156 = por %p154, %p155
    %p158 = scmp.ne.s32.totalorder %s143, %s157
    %p159 = scmp.eq.s32.totalorder %s18, 0
    %p160 = por %p158, %p159
    %p161 = scmp.le.s32.totalorder 1, %s12
    %p162 = scmp.lt.s32.totalorder %s12, 4
    %p163 = pnand %p161, %p162
    %p164 = pneg %p163
    // Predicated region
    $region9: #{encoder_forward.1} parent=5 // pred_check
      _
    $region10: #{encoder_forward.1} parent=5 // pred_check_branch
      %166 = sbr.rel (%p163) target = $region12
    $region11: #{encoder_forward.1} parent=5 // pred_region
      %s167 = ssub.s32 %s12, 1
      // Predicated region
      $region13: #{encoder_forward.1} parent=11 // pred_check
        %p168 = pneg %p59
      $region14: #{encoder_forward.1} parent=11 // pred_check_branch
        %170 = sbr.rel (%p168) target = $region16
      $region15: #{encoder_forward.1} parent=11 // pred_region
        _
      $region16: #{encoder_forward.1} parent=11 // pred_fallthru
        _
      // Predicated region
      $region17: #{encoder_forward.1} parent=11 // pred_check
        %p171 = pneg %p80
      $region18: #{encoder_forward.1} parent=11 // pred_check_branch
        %173 = sbr.rel (%p171) target = $region20
      $region19: #{encoder_forward.1} parent=11 // pred_region
        _
      $region20: #{encoder_forward.1} parent=11 // pred_fallthru
        _
    $region12: #{encoder_forward.1} parent=5 // pred_fallthru
      _
    %p174 = scmp.lt.s32.totalorder %s12, 3
    // Predicated region
    $region21: #{encoder_forward.1} parent=5 // pred_check
      %p175 = pneg %p174
    $region22: #{encoder_forward.1} parent=5 // pred_check_branch
      %177 = sbr.rel (%p175) target = $region24
    $region23: #{encoder_forward.1} parent=5 // pred_region
      // Predicated region
      $region25: #{encoder_forward.1} parent=23 // pred_check
        %p178 = pneg %p32
      $region26: #{encoder_forward.1} parent=23 // pred_check_branch
        %180 = sbr.rel (%p178) target = $region28
      $region27: #{encoder_forward.1} parent=23 // pred_region
        %s181 = smul.u32 4, %s12
        %p182 = scmp.lt.s32.totalorder %s181, 11
        %s183 = scalar_select %p182, %s181, 11
        %s184 = smul.addr %s183, 6
        %s185 = smul.addr %s184, 8
        %s186 = scalar_lea.vmem %s0, %s185
        %s187 = smul.u32 4, %s12
      $region28: #{encoder_forward.1} parent=23 // pred_fallthru
        _
    $region24: #{encoder_forward.1} parent=5 // pred_fallthru
      _
    %p188 = scmp.le.s32.totalorder 1, %s12
    %p189 = scmp.lt.s32.totalorder %s12, 4
    %p190 = pnand %p188, %p189
    %p191 = pneg %p190
    // Predicated region
    $region29: #{encoder_forward.1} parent=5 // pred_check
      _
    $region30: #{encoder_forward.1} parent=5 // pred_check_branch
      %193 = sbr.rel (%p190) target = $region32
    $region31: #{encoder_forward.1} parent=5 // pred_region
      %s194 = ssub.s32 %s12, 1
      %s195 = smul.u32 4, %s17
      %p196 = scmp.lt.s32.totalorder %s195, 11
      %s197 = scalar_select %p196, %s195, 11
      %s198 = smul.addr %s197, 6
      %s199 = smul.addr %s198, 8
      %s200 = scalar_lea.vmem %s0, %s199
      %p201 = pneg %p38
      %p202 = pneg %p35
      %p203 = pneg %p59
      %p204 = pneg %p56
      %p205 = pneg %p80
      %p206 = pneg %p77
      %p207 = pneg %p106
      %p208 = pneg %p103
      %s209 = smul.u32 4, %s17
      %p210 = scmp.lt.s32.totalorder %s209, 11
      %s211 = scalar_select %p210, %s209, 11
      %s212 = smul.addr %s211, 8
      %s213 = scalar_lea.vmem %s3, %s212
      %p214 = pneg %p132
      %p215 = pneg %p129
      %s216 = smul.u32 4, %s17
      %p217 = scmp.lt.s32.totalorder %s216, 11
      %s218 = scalar_select %p217, %s216, 11
      %s219 = smul.addr %s218, 8
      %s220 = scalar_lea.vmem %s4, %s219
      %p221 = pneg %p153
      %p222 = pneg %p150
      %s223 = smul.u32 4, %s17
      %p224 = scmp.lt.s32.totalorder %s223, 11
      %s225 = scalar_select %p224, %s223, 11
      %s226 = smul.addr %s225, 6
      %s227 = smul.addr %s226, 8
      %s228 = scalar_lea.vmem %s0, %s227
      %s229 = smul.u32 4, %s17
      %s230 = smul.u32 4, %s17
      %p231 = scmp.lt.s32.totalorder %s230, 11
      %s232 = scalar_select %p231, %s230, 11
      %s233 = smul.addr %s232, 8
      %s234 = scalar_lea.vmem %s3, %s233
      %s235 = smul.u32 4, %s17
      %s236 = smul.u32 4, %s17
      %p237 = scmp.lt.s32.totalorder %s236, 11
      %s238 = scalar_select %p237, %s236, 11
      %s239 = smul.addr %s238, 8
      %s240 = scalar_lea.vmem %s4, %s239
      %s241 = smul.u32 4, %s17
      %p242 = scmp.eq.s32.totalorder %s17, 0
      // Predicated region
      $region33: #{encoder_forward.1} parent=31 // pred_check
        %p243 = pneg %p242
      $region34: #{encoder_forward.1} parent=31 // pred_check_branch
        %245 = sbr.rel (%p243) target = $region36
      $region35: #{encoder_forward.1} parent=31 // pred_region
        %246 = vst [vmem:[#allocation2] sm:$0xff] 0.0
        %247 = vst [vmem:[#allocation2 + $0x8] sm:$0xff] 0.0
      $region36: #{encoder_forward.1} parent=31 // pred_fallthru
        _
      %v248 = vld [vmem:[%s1] sm:$0xff]
      %v249 = vld [vmem:[%s1 + $0x8] sm:$0xff]
      %v250 = vld [vmem:[%s1 + $0x10] sm:$0xff]
      %v251 = vld [vmem:[%s1 + $0x18] sm:$0xff]
      %v252 = vld [vmem:[%s1 + $0x20] sm:$0xff]
      %v253 = vld [vmem:[%s1 + $0x28] sm:$0xff]
      %v254 = vld [vmem:[%s1 + $0x30] sm:$0xff]
      %v255 = vld [vmem:[%s1 + $0x38] sm:$0xff]
      %v256 = vld [vmem:[%s1 + $0x40] sm:$0xff]
      %v257 = vld [vmem:[%s1 + $0x48] sm:$0xff]
      %v258 = vld [vmem:[%s1 + $0x50] sm:$0xff]
      %v259 = vld [vmem:[%s1 + $0x58] sm:$0xff]
      %v260 = vld [vmem:[%s1 + $0x60] sm:$0xff]
      %v261 = vld [vmem:[%s1 + $0x68] sm:$0xff]
      %v262 = vld [vmem:[%s1 + $0x70] sm:$0xff]
      %v263 = vld [vmem:[%s1 + $0x78] sm:$0xff]
      %v264 = vld [vmem:[%s1 + $0x80] sm:$0xff]
      %v265 = vld [vmem:[%s1 + $0x88] sm:$0xff]
      %v266 = vld [vmem:[%s1 + $0x90] sm:$0xff]
      %v267 = vld [vmem:[%s1 + $0x98] sm:$0xff]
      %v268 = vld [vmem:[%s1 + $0xa0] sm:$0xff]
      %v269 = vld [vmem:[%s1 + $0xa8] sm:$0xff]
      %v270 = vld [vmem:[%s1 + $0xb0] sm:$0xff]
      %v271 = vld [vmem:[%s1 + $0xb8] sm:$0xff]
      %v272 = vld [vmem:[%s1 + $0xc0] sm:$0xff]
      %v273 = vld [vmem:[%s1 + $0xc8] sm:$0xff]
      %v274 = vld [vmem:[%s1 + $0xd0] sm:$0xff]
      %v275 = vld [vmem:[%s1 + $0xd8] sm:$0xff]
      %v276 = vld [vmem:[%s1 + $0xe0] sm:$0xff]
      %v277 = vld [vmem:[%s1 + $0xe8] sm:$0xff]
      %v278 = vld [vmem:[%s1 + $0xf0] sm:$0xff]
      %v279 = vld [vmem:[%s1 + $0xf8] sm:$0xff]
      %v280 = vld [vmem:[%s1 + $0x100] sm:$0xff]
      %v281 = vld [vmem:[%s1 + $0x108] sm:$0xff]
      %v282 = vld [vmem:[%s1 + $0x110] sm:$0xff]
      %v283 = vld [vmem:[%s1 + $0x118] sm:$0xff]
      %v284 = vld [vmem:[%s1 + $0x120] sm:$0xff]
      %v285 = vld [vmem:[%s1 + $0x128] sm:$0xff]
      %v286 = vld [vmem:[%s1 + $0x130] sm:$0xff]
      %v287 = vld [vmem:[%s1 + $0x138] sm:$0xff]
      %v288 = vld [vmem:[%s1 + $0x140] sm:$0xff]
      %v289 = vld [vmem:[%s1 + $0x148] sm:$0xff]
      %v290 = vld [vmem:[%s1 + $0x150] sm:$0xff]
      %v291 = vld [vmem:[%s1 + $0x158] sm:$0xff]
      %v292 = vld [vmem:[%s1 + $0x160] sm:$0xff]
      %v293 = vld [vmem:[%s1 + $0x168] sm:$0xff]
      %v294 = vld [vmem:[%s1 + $0x170] sm:$0xff]
      %v295 = vld [vmem:[%s1 + $0x178] sm:$0xff]
      %v296 = vld [vmem:[%s1 + $0x180] sm:$0xff]
      %v297 = vld [vmem:[%s1 + $0x188] sm:$0xff]
      %v298 = vld [vmem:[%s1 + $0x190] sm:$0xff]
      %v299 = vld [vmem:[%s1 + $0x198] sm:$0xff]
      %v300 = vld [vmem:[%s1 + $0x1a0] sm:$0xff]
      %v301 = vld [vmem:[%s1 + $0x1a8] sm:$0xff]
      %v302 = vld [vmem:[%s1 + $0x1b0] sm:$0xff]
      %v303 = vld [vmem:[%s1 + $0x1b8] sm:$0xff]
      %v304 = vld [vmem:[%s1 + $0x1c0] sm:$0xff]
      %v305 = vld [vmem:[%s1 + $0x1c8] sm:$0xff]
      %v306 = vld [vmem:[%s1 + $0x1d0] sm:$0xff]
      %v307 = vld [vmem:[%s1 + $0x1d8] sm:$0xff]
      %v308 = vld [vmem:[%s1 + $0x1e0] sm:$0xff]
      %v309 = vld [vmem:[%s1 + $0x1e8] sm:$0xff]
      %v310 = vld [vmem:[%s1 + $0x1f0] sm:$0xff]
      %v311 = vld [vmem:[%s1 + $0x1f8] sm:$0xff]
      %v312 = vld [vmem:[%s1 + $0x200] sm:$0xff]
      %v313 = vld [vmem:[%s1 + $0x208] sm:$0xff]
      %v314 = vld [vmem:[%s1 + $0x210] sm:$0xff]
      %v315 = vld [vmem:[%s1 + $0x218] sm:$0xff]
      %v316 = vld [vmem:[%s1 + $0x220] sm:$0xff]
      %v317 = vld [vmem:[%s1 + $0x228] sm:$0xff]
      %v318 = vld [vmem:[%s1 + $0x230] sm:$0xff]
      %v319 = vld [vmem:[%s1 + $0x238] sm:$0xff]
      %v320 = vld [vmem:[%s1 + $0x240] sm:$0xff]
      %v321 = vld [vmem:[%s1 + $0x248] sm:$0xff]
      %v322 = vld [vmem:[%s1 + $0x250] sm:$0xff]
      %v323 = vld [vmem:[%s1 + $0x258] sm:$0xff]
      %v324 = vld [vmem:[%s1 + $0x260] sm:$0xff]
      %v325 = vld [vmem:[%s1 + $0x268] sm:$0xff]
      %v326 = vld [vmem:[%s1 + $0x270] sm:$0xff]
      %v327 = vld [vmem:[%s1 + $0x278] sm:$0xff]
      %v328 = vld [vmem:[%s1 + $0x280] sm:$0xff]
      %v329 = vld [vmem:[%s1 + $0x288] sm:$0xff]
      %v330 = vld [vmem:[%s1 + $0x290] sm:$0xff]
      %v331 = vld [vmem:[%s1 + $0x298] sm:$0xff]
      %v332 = vld [vmem:[%s1 + $0x2a0] sm:$0xff]
      %v333 = vld [vmem:[%s1 + $0x2a8] sm:$0xff]
      %v334 = vld [vmem:[%s1 + $0x2b0] sm:$0xff]
      %v335 = vld [vmem:[%s1 + $0x2b8] sm:$0xff]
      %v336 = vld [vmem:[%s1 + $0x2c0] sm:$0xff]
      %v337 = vld [vmem:[%s1 + $0x2c8] sm:$0xff]
      %v338 = vld [vmem:[%s1 + $0x2d0] sm:$0xff]
      %v339 = vld [vmem:[%s1 + $0x2d8] sm:$0xff]
      %v340 = vld [vmem:[%s1 + $0x2e0] sm:$0xff]
      %v341 = vld [vmem:[%s1 + $0x2e8] sm:$0xff]
      %v342 = vld [vmem:[%s1 + $0x2f0] sm:$0xff]
      %v343 = vld [vmem:[%s1 + $0x2f8] sm:$0xff]
      %v344 = vld [vmem:[%s1 + $0x300] sm:$0xff]
      %v345 = vld [vmem:[%s1 + $0x308] sm:$0xff]
      %v346 = vld [vmem:[%s1 + $0x310] sm:$0xff]
      %v347 = vld [vmem:[%s1 + $0x318] sm:$0xff]
      %v348 = vld [vmem:[%s1 + $0x320] sm:$0xff]
      %v349 = vld [vmem:[%s1 + $0x328] sm:$0xff]
      %v350 = vld [vmem:[%s1 + $0x330] sm:$0xff]
      %v351 = vld [vmem:[%s1 + $0x338] sm:$0xff]
      %v352 = vld [vmem:[%s1 + $0x340] sm:$0xff]
      %v353 = vld [vmem:[%s1 + $0x348] sm:$0xff]
      %v354 = vld [vmem:[%s1 + $0x350] sm:$0xff]
      %v355 = vld [vmem:[%s1 + $0x358] sm:$0xff]
      %v356 = vld [vmem:[%s1 + $0x360] sm:$0xff]
      %v357 = vld [vmem:[%s1 + $0x368] sm:$0xff]
      %v358 = vld [vmem:[%s1 + $0x370] sm:$0xff]
      %v359 = vld [vmem:[%s1 + $0x378] sm:$0xff]
      %v360 = vld [vmem:[%s1 + $0x380] sm:$0xff]
      %v361 = vld [vmem:[%s1 + $0x388] sm:$0xff]
      %v362 = vld [vmem:[%s1 + $0x390] sm:$0xff]
      %v363 = vld [vmem:[%s1 + $0x398] sm:$0xff]
      %v364 = vld [vmem:[%s1 + $0x3a0] sm:$0xff]
      %v365 = vld [vmem:[%s1 + $0x3a8] sm:$0xff]
      %v366 = vld [vmem:[%s1 + $0x3b0] sm:$0xff]
      %v367 = vld [vmem:[%s1 + $0x3b8] sm:$0xff]
      %v368 = vld [vmem:[%s1 + $0x3c0] sm:$0xff]
      %v369 = vld [vmem:[%s1 + $0x3c8] sm:$0xff]
      %v370 = vld [vmem:[%s1 + $0x3d0] sm:$0xff]
      %v371 = vld [vmem:[%s1 + $0x3d8] sm:$0xff]
      %v372 = vld [vmem:[%s1 + $0x3e0] sm:$0xff]
      %v373 = vld [vmem:[%s1 + $0x3e8] sm:$0xff]
      %v374 = vld [vmem:[%s1 + $0x3f0] sm:$0xff]
      %v375 = vld [vmem:[%s1 + $0x3f8] sm:$0xff]
      %v376 = vld [vmem:[%s1 + $0x400] sm:$0xff]
      %v377 = vld [vmem:[%s1 + $0x408] sm:$0xff]
      %v378 = vld [vmem:[%s1 + $0x410] sm:$0xff]
      %v379 = vld [vmem:[%s1 + $0x418] sm:$0xff]
      %v380 = vld [vmem:[%s1 + $0x420] sm:$0xff]
      %v381 = vld [vmem:[%s1 + $0x428] sm:$0xff]
      %v382 = vld [vmem:[%s1 + $0x430] sm:$0xff]
      %v383 = vld [vmem:[%s1 + $0x438] sm:$0xff]
      %v384 = vld [vmem:[%s1 + $0x440] sm:$0xff]
      %v385 = vld [vmem:[%s1 + $0x448] sm:$0xff]
      %v386 = vld [vmem:[%s1 + $0x450] sm:$0xff]
      %v387 = vld [vmem:[%s1 + $0x458] sm:$0xff]
      %v388 = vld [vmem:[%s1 + $0x460] sm:$0xff]
      %v389 = vld [vmem:[%s1 + $0x468] sm:$0xff]
      %v390 = vld [vmem:[%s1 + $0x470] sm:$0xff]
      %v391 = vld [vmem:[%s1 + $0x478] sm:$0xff]
      %v392 = vld [vmem:[%s1 + $0x480] sm:$0xff]
      %v393 = vld [vmem:[%s1 + $0x488] sm:$0xff]
      %v394 = vld [vmem:[%s1 + $0x490] sm:$0xff]
      %v395 = vld [vmem:[%s1 + $0x498] sm:$0xff]
      %v396 = vld [vmem:[%s1 + $0x4a0] sm:$0xff]
      %v397 = vld [vmem:[%s1 + $0x4a8] sm:$0xff]
      %v398 = vld [vmem:[%s1 + $0x4b0] sm:$0xff]
      %v399 = vld [vmem:[%s1 + $0x4b8] sm:$0xff]
      %v400 = vld [vmem:[%s1 + $0x4c0] sm:$0xff]
      %v401 = vld [vmem:[%s1 + $0x4c8] sm:$0xff]
      %v402 = vld [vmem:[%s1 + $0x4d0] sm:$0xff]
      %v403 = vld [vmem:[%s1 + $0x4d8] sm:$0xff]
      %v404 = vld [vmem:[%s1 + $0x4e0] sm:$0xff]
      %v405 = vld [vmem:[%s1 + $0x4e8] sm:$0xff]
      %v406 = vld [vmem:[%s1 + $0x4f0] sm:$0xff]
      %v407 = vld [vmem:[%s1 + $0x4f8] sm:$0xff]
      %v408 = vld [vmem:[%s1 + $0x500] sm:$0xff]
      %v409 = vld [vmem:[%s1 + $0x508] sm:$0xff]
      %v410 = vld [vmem:[%s1 + $0x510] sm:$0xff]
      %v411 = vld [vmem:[%s1 + $0x518] sm:$0xff]
      %v412 = vld [vmem:[%s1 + $0x520] sm:$0xff]
      %v413 = vld [vmem:[%s1 + $0x528] sm:$0xff]
      %v414 = vld [vmem:[%s1 + $0x530] sm:$0xff]
      %v415 = vld [vmem:[%s1 + $0x538] sm:$0xff]
      %v416 = vld [vmem:[%s1 + $0x540] sm:$0xff]
      %v417 = vld [vmem:[%s1 + $0x548] sm:$0xff]
      %v418 = vld [vmem:[%s1 + $0x550] sm:$0xff]
      %v419 = vld [vmem:[%s1 + $0x558] sm:$0xff]
      %v420 = vld [vmem:[%s1 + $0x560] sm:$0xff]
      %v421 = vld [vmem:[%s1 + $0x568] sm:$0xff]
      %v422 = vld [vmem:[%s1 + $0x570] sm:$0xff]
      %v423 = vld [vmem:[%s1 + $0x578] sm:$0xff]
      %v424 = vld [vmem:[%s1 + $0x580] sm:$0xff]
      %v425 = vld [vmem:[%s1 + $0x588] sm:$0xff]
      %v426 = vld [vmem:[%s1 + $0x590] sm:$0xff]
      %v427 = vld [vmem:[%s1 + $0x598] sm:$0xff]
      %v428 = vld [vmem:[%s1 + $0x5a0] sm:$0xff]
      %v429 = vld [vmem:[%s1 + $0x5a8] sm:$0xff]
      %v430 = vld [vmem:[%s1 + $0x5b0] sm:$0xff]
      %v431 = vld [vmem:[%s1 + $0x5b8] sm:$0xff]
      %v432 = vld [vmem:[%s1 + $0x5c0] sm:$0xff]
      %v433 = vld [vmem:[%s1 + $0x5c8] sm:$0xff]
      %v434 = vld [vmem:[%s1 + $0x5d0] sm:$0xff]
      %v435 = vld [vmem:[%s1 + $0x5d8] sm:$0xff]
      %v436 = vld [vmem:[%s1 + $0x5e0] sm:$0xff]
      %v437 = vld [vmem:[%s1 + $0x5e8] sm:$0xff]
      %v438 = vld [vmem:[%s1 + $0x5f0] sm:$0xff]
      %v439 = vld [vmem:[%s1 + $0x5f8] sm:$0xff]
      %v440 = vld [vmem:[%s2] sm:$0x3]
      %v442 = vlaneseq
      %v443 = vshrl.u32 %v442, 7
      %v444 = vsub.s32 0, %v443
      %v445 = vrot.slane %v440, %v444
      %v446 = vlaneseq
      %v447 = vshrl.u32 %v446, 7
      %v448 = vsub.s32 1, %v447
      %v449 = vrot.slane %v440, %v448
      %v452 = vld [vmem:[#allocation2] sm:$0xff]
      %v453 = vld [vmem:[#allocation2 + $0x8] sm:$0xff]
      %454 = vmatprep.subr.mxu0 %v249
      %455 = vmatpush1.msra.mxu0 %v248
      %456 = vmatprep.subr.mxu0 %v255
      %457 = vmatpush1.msra.mxu0 %v254
      %458 = vmatprep.subr.mxu0 %v261
      %459 = vmatpush1.msra.mxu0 %v260
      %460 = vmatprep.subr.mxu0 %v267
      %461 = vmatpush1.msra.mxu0 %v266
      %462 = vmatprep.subr.mxu0 %v273
      %463 = vmatpush1.msra.mxu0 %v272
      %464 = vmatprep.subr.mxu0 %v279
      %465 = vmatpush1.msra.mxu0 %v278
      %466 = vmatprep.subr.mxu0 %v285
      %467 = vmatpush1.msra.mxu0 %v284
      %468 = vmatprep.subr.mxu0 %v291
      %469 = vmatpush1.msra.mxu0 %v290
      %470 = vmatprep.subr.mxu0 %v297
      %471 = vmatpush1.msra.mxu0 %v296
      %472 = vmatprep.subr.mxu0 %v303
      %473 = vmatpush1.msra.mxu0 %v302
      %474 = vmatprep.subr.mxu0 %v309
      %475 = vmatpush1.msra.mxu0 %v308
      %476 = vmatprep.subr.mxu0 %v315
      %477 = vmatpush1.msra.mxu0 %v314
      %478 = vmatprep.subr.mxu0 %v321
      %479 = vmatpush1.msra.mxu0 %v320
      %480 = vmatprep.subr.mxu0 %v327
      %481 = vmatpush1.msra.mxu0 %v326
      %482 = vmatprep.subr.mxu0 %v333
      %483 = vmatpush1.msra.mxu0 %v332
      %484 = vmatprep.subr.mxu0 %v339
      %485 = vmatpush1.msra.mxu0 %v338
      %486 = vmatprep.subr.mxu0 %v345
      %487 = vmatpush1.msra.mxu0 %v344
      %488 = vmatprep.subr.mxu0 %v351
      %489 = vmatpush1.msra.mxu0 %v350
      %490 = vmatprep.subr.mxu0 %v357
      %491 = vmatpush1.msra.mxu0 %v356
      %492 = vmatprep.subr.mxu0 %v363
      %493 = vmatpush1.msra.mxu0 %v362
      %494 = vmatprep.subr.mxu0 %v369
      %495 = vmatpush1.msra.mxu0 %v368
      %496 = vmatprep.subr.mxu0 %v375
      %497 = vmatpush1.msra.mxu0 %v374
      %498 = vmatprep.subr.mxu0 %v381
      %499 = vmatpush1.msra.mxu0 %v380
      %500 = vmatprep.subr.mxu0 %v387
      %501 = vmatpush1.msra.mxu0 %v386
      %502 = vmatprep.subr.mxu0 %v393
      %503 = vmatpush1.msra.mxu0 %v392
      %504 = vmatprep.subr.mxu0 %v399
      %505 = vmatpush1.msra.mxu0 %v398
      %506 = vmatprep.subr.mxu0 %v405
      %507 = vmatpush1.msra.mxu0 %v404
      %508 = vmatprep.subr.mxu0 %v411
      %509 = vmatpush1.msra.mxu0 %v410
      %510 = vmatprep.subr.mxu0 %v417
      %511 = vmatpush1.msra.mxu0 %v416
      %512 = vmatprep.subr.mxu0 %v423
      %513 = vmatpush1.msra.mxu0 %v422
      %514 = vmatprep.subr.mxu0 %v429
      %515 = vmatpush1.msra.mxu0 %v428
      %516 = vmatprep.subr.mxu0 %v435
      %517 = vmatpush1.msra.mxu0 %v434
      %518 = vmatprep.mubr.f32.mxu0 %v453
      %519 = vmatmul.mubr.f32.gmra.mrb[0].mxu0 %v452
      %v520 = vpop.f32.mrb[0].mxu0
      %v521 = vadd.f32 0.0, %v520
      %v522 = vpop.f32.mrb[0].mxu0
      %v523 = vadd.f32 0.0, %v522
      %524 = vdwg.mxu0
      %525 = vmatprep.subr.mxu0 %v251
      %526 = vmatpush1.msra.mxu0 %v250
      %527 = vmatprep.subr.mxu0 %v257
      %528 = vmatpush1.msra.mxu0 %v256
      %529 = vmatprep.subr.mxu0 %v263
      %530 = vmatpush1.msra.mxu0 %v262
      %531 = vmatprep.subr.mxu0 %v269
      %532 = vmatpush1.msra.mxu0 %v268
      %533 = vmatprep.subr.mxu0 %v275
      %534 = vmatpush1.msra.mxu0 %v274
      %535 = vmatprep.subr.mxu0 %v281
      %536 = vmatpush1.msra.mxu0 %v280
      %537 = vmatprep.subr.mxu0 %v287
      %538 = vmatpush1.msra.mxu0 %v286
      %539 = vmatprep.subr.mxu0 %v293
      %540 = vmatpush1.msra.mxu0 %v292
      %541 = vmatprep.subr.mxu0 %v299
      %542 = vmatpush1.msra.mxu0 %v298
      %543 = vmatprep.subr.mxu0 %v305
      %544 = vmatpush1.msra.mxu0 %v304
      %545 = vmatprep.subr.mxu0 %v311
      %546 = vmatpush1.msra.mxu0 %v310
      %547 = vmatprep.subr.mxu0 %v317
      %548 = vmatpush1.msra.mxu0 %v316
      %549 = vmatprep.subr.mxu0 %v323
      %550 = vmatpush1.msra.mxu0 %v322
      %551 = vmatprep.subr.mxu0 %v329
      %552 = vmatpush1.msra.mxu0 %v328
      %553 = vmatprep.subr.mxu0 %v335
      %554 = vmatpush1.msra.mxu0 %v334
      %555 = vmatprep.subr.mxu0 %v341
      %556 = vmatpush1.msra.mxu0 %v340
      %557 = vmatprep.subr.mxu0 %v347
      %558 = vmatpush1.msra.mxu0 %v346
      %559 = vmatprep.subr.mxu0 %v353
      %560 = vmatpush1.msra.mxu0 %v352
      %561 = vmatprep.subr.mxu0 %v359
      %562 = vmatpush1.msra.mxu0 %v358
      %563 = vmatprep.subr.mxu0 %v365
      %564 = vmatpush1.msra.mxu0 %v364
      %565 = vmatprep.subr.mxu0 %v371
      %566 = vmatpush1.msra.mxu0 %v370
      %567 = vmatprep.subr.mxu0 %v377
      %568 = vmatpush1.msra.mxu0 %v376
      %569 = vmatprep.subr.mxu0 %v383
      %570 = vmatpush1.msra.mxu0 %v382
      %571 = vmatprep.subr.mxu0 %v389
      %572 = vmatpush1.msra.mxu0 %v388
      %573 = vmatprep.subr.mxu0 %v395
      %574 = vmatpush1.msra.mxu0 %v394
      %575 = vmatprep.subr.mxu0 %v401
      %576 = vmatpush1.msra.mxu0 %v400
      %577 = vmatprep.subr.mxu0 %v407
      %578 = vmatpush1.msra.mxu0 %v406
      %579 = vmatprep.subr.mxu0 %v413
      %580 = vmatpush1.msra.mxu0 %v412
      %581 = vmatprep.subr.mxu0 %v419
      %582 = vmatpush1.msra.mxu0 %v418
      %583 = vmatprep.subr.mxu0 %v425
      %584 = vmatpush1.msra.mxu0 %v424
      %585 = vmatprep.subr.mxu0 %v431
      %586 = vmatpush1.msra.mxu0 %v430
      %587 = vmatprep.subr.mxu0 %v437
      %588 = vmatpush1.msra.mxu0 %v436
      %589 = vmatprep.mubr.f32.mxu0 %v453
      %590 = vmatmul.mubr.f32.gmra.mrb[0].mxu0 %v452
      %v591 = vpop.f32.mrb[0].mxu0
      %v592 = vadd.f32 0.0, %v591
      %v593 = vpop.f32.mrb[0].mxu0
      %v594 = vadd.f32 0.0, %v593
      %595 = vdwg.mxu0
      %596 = vmatprep.subr.mxu0 %v253
      %597 = vmatpush1.msra.mxu0 %v252
      %598 = vmatprep.subr.mxu0 %v259
      %599 = vmatpush1.msra.mxu0 %v258
      %600 = vmatprep.subr.mxu0 %v265
      %601 = vmatpush1.msra.mxu0 %v264
      %602 = vmatprep.subr.mxu0 %v271
      %603 = vmatpush1.msra.mxu0 %v270
      %604 = vmatprep.subr.mxu0 %v277
      %605 = vmatpush1.msra.mxu0 %v276
      %606 = vmatprep.subr.mxu0 %v283
      %607 = vmatpush1.msra.mxu0 %v282
      %608 = vmatprep.subr.mxu0 %v289
      %609 = vmatpush1.msra.mxu0 %v288
      %610 = vmatprep.subr.mxu0 %v295
      %611 = vmatpush1.msra.mxu0 %v294
      %612 = vmatprep.subr.mxu0 %v301
      %613 = vmatpush1.msra.mxu0 %v300
      %614 = vmatprep.subr.mxu0 %v307
      %615 = vmatpush1.msra.mxu0 %v306
      %616 = vmatprep.subr.mxu0 %v313
      %617 = vmatpush1.msra.mxu0 %v312
      %618 = vmatprep.subr.mxu0 %v319
      %619 = vmatpush1.msra.mxu0 %v318
      %620 = vmatprep.subr.mxu0 %v325
      %621 = vmatpush1.msra.mxu0 %v324
      %622 = vmatprep.subr.mxu0 %v331
      %623 = vmatpush1.msra.mxu0 %v330
      %624 = vmatprep.subr.mxu0 %v337
      %625 = vmatpush1.msra.mxu0 %v336
      %626 = vmatprep.subr.mxu0 %v343
      %627 = vmatpush1.msra.mxu0 %v342
      %628 = vmatprep.subr.mxu0 %v349
      %629 = vmatpush1.msra.mxu0 %v348
      %630 = vmatprep.subr.mxu0 %v355
      %631 = vmatpush1.msra.mxu0 %v354
      %632 = vmatprep.subr.mxu0 %v361
      %633 = vmatpush1.msra.mxu0 %v360
      %634 = vmatprep.subr.mxu0 %v367
      %635 = vmatpush1.msra.mxu0 %v366
      %636 = vmatprep.subr.mxu0 %v373
      %637 = vmatpush1.msra.mxu0 %v372
      %638 = vmatprep.subr.mxu0 %v379
      %639 = vmatpush1.msra.mxu0 %v378
      %640 = vmatprep.subr.mxu0 %v385
      %641 = vmatpush1.msra.mxu0 %v384
      %642 = vmatprep.subr.mxu0 %v391
      %643 = vmatpush1.msra.mxu0 %v390
      %644 = vmatprep.subr.mxu0 %v397
      %645 = vmatpush1.msra.mxu0 %v396
      %646 = vmatprep.subr.mxu0 %v403
      %647 = vmatpush1.msra.mxu0 %v402
      %648 = vmatprep.subr.mxu0 %v409
      %649 = vmatpush1.msra.mxu0 %v408
      %650 = vmatprep.subr.mxu0 %v415
      %651 = vmatpush1.msra.mxu0 %v414
      %652 = vmatprep.subr.mxu0 %v421
      %653 = vmatpush1.msra.mxu0 %v420
      %654 = vmatprep.subr.mxu0 %v427
      %655 = vmatpush1.msra.mxu0 %v426
      %656 = vmatprep.subr.mxu0 %v433
      %657 = vmatpush1.msra.mxu0 %v432
      %658 = vmatprep.subr.mxu0 %v439
      %659 = vmatpush1.msra.mxu0 %v438
      %660 = vmatprep.mubr.f32.mxu0 %v453
      %661 = vmatmul.mubr.f32.gmra.mrb[0].mxu0 %v452
      %v662 = vpop.f32.mrb[0].mxu0
      %v663 = vadd.f32 0.0, %v662
      %v664 = vpop.f32.mrb[0].mxu0
      %v665 = vadd.f32 0.0, %v664
      %666 = vdwg.mxu0
      %v667 = vld [vmem:[%s228] sm:$0xff]
      %v668 = vld [vmem:[%s228 + $0x8] sm:$0xff]
      %v669 = vld [vmem:[%s228 + $0x10] sm:$0xff]
      %v670 = vld [vmem:[%s228 + $0x18] sm:$0xff]
      %v671 = vld [vmem:[%s228 + $0x20] sm:$0xff]
      %v672 = vld [vmem:[%s228 + $0x28] sm:$0xff]
      %v673 = vadd.f32 %v667, %v521
      %v674 = vadd.f32 %v668, %v523
      %v675 = vadd.f32 %v669, %v592
      %v676 = vadd.f32 %v670, %v594
      %v677 = vxor.u32 %v673, 2147483648
      %v678 = vxor.u32 %v674, 2147483648
      %v679 = vxor.u32 %v675, 2147483648
      %v680 = vxor.u32 %v676, 2147483648
      %v681 = vmul.f32 %v677, 1.442695
      %v682 = vpow.pop %v681
      %v683 = vmul.f32 %v678, 1.442695
      %v684 = vpow.pop %v683
      %v685 = vmul.f32 %v679, 1.442695
      %v686 = vpow.pop %v685
      %v687 = vmul.f32 %v680, 1.442695
      %v688 = vpow.pop %v687
      %v689 = vadd.f32 %v682, 1.0
      %v690 = vadd.f32 %v684, 1.0
      %v691 = vadd.f32 %v686, 1.0
      %v692 = vadd.f32 %v688, 1.0
      %v693 = vrcp.pop %v689
      %v694 = vmul.f32 1.0, %v693
      %v695 = vrcp.pop %v690
      %v696 = vmul.f32 1.0, %v695
      %v697 = vrcp.pop %v691
      %v698 = vmul.f32 1.0, %v697
      %v699 = vrcp.pop %v692
      %v700 = vmul.f32 1.0, %v699
      %v701 = vadd.f32 %v663, %v445
      %v702 = vadd.f32 %v665, %v449
      %v703 = vmul.f32 %v694, %v701
      %v704 = vmul.f32 %v696, %v702
      %v705 = vadd.f32 %v671, %v703
      %v706 = vadd.f32 %v672, %v704
      %v707 = vtanh.pop %v705
      %v708 = vtanh.pop %v706
      %v709 = vsub.f32 1.0, %v698
      %v710 = vsub.f32 1.0, %v700
      %v711 = vmul.f32 %v709, %v707
      %v712 = vmul.f32 %v710, %v708
      %v713 = vmul.f32 %v698, %v452
      %v714 = vmul.f32 %v700, %v453
      %v715 = vadd.f32 %v711, %v713
      %v716 = vadd.f32 %v712, %v714
      %s717 = smul.u32 %s17, 4
      %p718 = scmp.lt.s32.totalorder %s717, 10
      %s719 = scalar_select %p718, 1, 0
      %v720 = vstv %s719
      %vm721 = vcmp.eq.s32.totalorder %v720, 1
      %v722 = vsel %vm721, %v715, %v452
      %v723 = vsel %vm721, %v716, %v453
      %724 = vst [vmem:[%s234] sm:$0xff] %v722
      %725 = vst [vmem:[%s240] sm:$0xff] %v723
      %726 = vmatprep.subr.mxu0 %v249
      %727 = vmatpush1.msra.mxu0 %v248
      %728 = vmatprep.subr.mxu0 %v255
      %729 = vmatpush1.msra.mxu0 %v254
      %730 = vmatprep.subr.mxu0 %v261
      %731 = vmatpush1.msra.mxu0 %v260
      %732 = vmatprep.subr.mxu0 %v267
      %733 = vmatpush1.msra.mxu0 %v266
      %734 = vmatprep.subr.mxu0 %v273
      %735 = vmatpush1.msra.mxu0 %v272
      %736 = vmatprep.subr.mxu0 %v279
      %737 = vmatpush1.msra.mxu0 %v278
      %738 = vmatprep.subr.mxu0 %v285
      %739 = vmatpush1.msra.mxu0 %v284
      %740 = vmatprep.subr.mxu0 %v291
      %741 = vmatpush1.msra.mxu0 %v290
      %742 = vmatprep.subr.mxu0 %v297
      %743 = vmatpush1.msra.mxu0 %v296
      %744 = vmatprep.subr.mxu0 %v303
      %745 = vmatpush1.msra.mxu0 %v302
      %746 = vmatprep.subr.mxu0 %v309
      %747 = vmatpush1.msra.mxu0 %v308
      %748 = vmatprep.subr.mxu0 %v315
      %749 = vmatpush1.msra.mxu0 %v314
      %750 = vmatprep.subr.mxu0 %v321
      %751 = vmatpush1.msra.mxu0 %v320
      %752 = vmatprep.subr.mxu0 %v327
      %753 = vmatpush1.msra.mxu0 %v326
      %754 = vmatprep.subr.mxu0 %v333
      %755 = vmatpush1.msra.mxu0 %v332
      %756 = vmatprep.subr.mxu0 %v339
      %757 = vmatpush1.msra.mxu0 %v338
      %758 = vmatprep.subr.mxu0 %v345
      %759 = vmatpush1.msra.mxu0 %v344
      %760 = vmatprep.subr.mxu0 %v351
      %761 = vmatpush1.msra.mxu0 %v350
      %762 = vmatprep.subr.mxu0 %v357
      %763 = vmatpush1.msra.mxu0 %v356
      %764 = vmatprep.subr.mxu0 %v363
      %765 = vmatpush1.msra.mxu0 %v362
      %766 = vmatprep.subr.mxu0 %v369
      %767 = vmatpush1.msra.mxu0 %v368
      %768 = vmatprep.subr.mxu0 %v375
      %769 = vmatpush1.msra.mxu0 %v374
      %770 = vmatprep.subr.mxu0 %v381
      %771 = vmatpush1.msra.mxu0 %v380
      %772 = vmatprep.subr.mxu0 %v387
      %773 = vmatpush1.msra.mxu0 %v386
      %774 = vmatprep.subr.mxu0 %v393
      %775 = vmatpush1.msra.mxu0 %v392
      %776 = vmatprep.subr.mxu0 %v399
      %777 = vmatpush1.msra.mxu0 %v398
      %778 = vmatprep.subr.mxu0 %v405
      %779 = vmatpush1.msra.mxu0 %v404
      %780 = vmatprep.subr.mxu0 %v411
      %781 = vmatpush1.msra.mxu0 %v410
      %782 = vmatprep.subr.mxu0 %v417
      %783 = vmatpush1.msra.mxu0 %v416
      %784 = vmatprep.subr.mxu0 %v423
      %785 = vmatpush1.msra.mxu0 %v422
      %786 = vmatprep.subr.mxu0 %v429
      %787 = vmatpush1.msra.mxu0 %v428
      %788 = vmatprep.subr.mxu0 %v435
      %789 = vmatpush1.msra.mxu0 %v434
      %790 = vmatprep.mubr.f32.mxu0 %v723
      %791 = vmatmul.mubr.f32.gmra.mrb[0].mxu0 %v722
      %v792 = vpop.f32.mrb[0].mxu0
      %v793 = vadd.f32 0.0, %v792
      %v794 = vpop.f32.mrb[0].mxu0
      %v795 = vadd.f32 0.0, %v794
      %796 = vdwg.mxu0
      %797 = vmatprep.subr.mxu0 %v251
      %798 = vmatpush1.msra.mxu0 %v250
      %799 = vmatprep.subr.mxu0 %v257
      %800 = vmatpush1.msra.mxu0 %v256
      %801 = vmatprep.subr.mxu0 %v263
      %802 = vmatpush1.msra.mxu0 %v262
      %803 = vmatprep.subr.mxu0 %v269
      %804 = vmatpush1.msra.mxu0 %v268
      %805 = vmatprep.subr.mxu0 %v275
      %806 = vmatpush1.msra.mxu0 %v274
      %807 = vmatprep.subr.mxu0 %v281
      %808 = vmatpush1.msra.mxu0 %v280
      %809 = vmatprep.subr.mxu0 %v287
      %810 = vmatpush1.msra.mxu0 %v286
      %811 = vmatprep.subr.mxu0 %v293
      %812 = vmatpush1.msra.mxu0 %v292
      %813 = vmatprep.subr.mxu0 %v299
      %814 = vmatpush1.msra.mxu0 %v298
      %815 = vmatprep.subr.mxu0 %v305
      %816 = vmatpush1.msra.mxu0 %v304
      %817 = vmatprep.subr.mxu0 %v311
      %818 = vmatpush1.msra.mxu0 %v310
      %819 = vmatprep.subr.mxu0 %v317
      %820 = vmatpush1.msra.mxu0 %v316
      %821 = vmatprep.subr.mxu0 %v323
      %822 = vmatpush1.msra.mxu0 %v322
      %823 = vmatprep.subr.mxu0 %v329
      %824 = vmatpush1.msra.mxu0 %v328
      %825 = vmatprep.subr.mxu0 %v335
      %826 = vmatpush1.msra.mxu0 %v334
      %827 = vmatprep.subr.mxu0 %v341
      %828 = vmatpush1.msra.mxu0 %v340
      %829 = vmatprep.subr.mxu0 %v347
      %830 = vmatpush1.msra.mxu0 %v346
      %831 = vmatprep.subr.mxu0 %v353
      %832 = vmatpush1.msra.mxu0 %v352
      %833 = vmatprep.subr.mxu0 %v359
      %834 = vmatpush1.msra.mxu0 %v358
      %835 = vmatprep.subr.mxu0 %v365
      %836 = vmatpush1.msra.mxu0 %v364
      %837 = vmatprep.subr.mxu0 %v371
      %838 = vmatpush1.msra.mxu0 %v370
      %839 = vmatprep.subr.mxu0 %v377
      %840 = vmatpush1.msra.mxu0 %v376
      %841 = vmatprep.subr.mxu0 %v383
      %842 = vmatpush1.msra.mxu0 %v382
      %843 = vmatprep.subr.mxu0 %v389
      %844 = vmatpush1.msra.mxu0 %v388
      %845 = vmatprep.subr.mxu0 %v395
      %846 = vmatpush1.msra.mxu0 %v394
      %847 = vmatprep.subr.mxu0 %v401
      %848 = vmatpush1.msra.mxu0 %v400
      %849 = vmatprep.subr.mxu0 %v407
      %850 = vmatpush1.msra.mxu0 %v406
      %851 = vmatprep.subr.mxu0 %v413
      %852 = vmatpush1.msra.mxu0 %v412
      %853 = vmatprep.subr.mxu0 %v419
      %854 = vmatpush1.msra.mxu0 %v418
      %855 = vmatprep.subr.mxu0 %v425
      %856 = vmatpush1.msra.mxu0 %v424
      %857 = vmatprep.subr.mxu0 %v431
      %858 = vmatpush1.msra.mxu0 %v430
      %859 = vmatprep.subr.mxu0 %v437
      %860 = vmatpush1.msra.mxu0 %v436
      %861 = vmatprep.mubr.f32.mxu0 %v723
      %862 = vmatmul.mubr.f32.gmra.mrb[0].mxu0 %v722
      %v863 = vpop.f32.mrb[0].mxu0
      %v864 = vadd.f32 0.0, %v863
      %v865 = vpop.f32.mrb[0].mxu0
      %v866 = vadd.f32 0.0, %v865
      %867 = vdwg.mxu0
      %868 = vmatprep.subr.mxu0 %v253
      %869 = vmatpush1.msra.mxu0 %v252
      %870 = vmatprep.subr.mxu0 %v259
      %871 = vmatpush1.msra.mxu0 %v258
      %872 = vmatprep.subr.mxu0 %v265
      %873 = vmatpush1.msra.mxu0 %v264
      %874 = vmatprep.subr.mxu0 %v271
      %875 = vmatpush1.msra.mxu0 %v270
      %876 = vmatprep.subr.mxu0 %v277
      %877 = vmatpush1.msra.mxu0 %v276
      %878 = vmatprep.subr.mxu0 %v283
      %879 = vmatpush1.msra.mxu0 %v282
      %880 = vmatprep.subr.mxu0 %v289
      %881 = vmatpush1.msra.mxu0 %v288
      %882 = vmatprep.subr.mxu0 %v295
      %883 = vmatpush1.msra.mxu0 %v294
      %884 = vmatprep.subr.mxu0 %v301
      %885 = vmatpush1.msra.mxu0 %v300
      %886 = vmatprep.subr.mxu0 %v307
      %887 = vmatpush1.msra.mxu0 %v306
      %888 = vmatprep.subr.mxu0 %v313
      %889 = vmatpush1.msra.mxu0 %v312
      %890 = vmatprep.subr.mxu0 %v319
      %891 = vmatpush1.msra.mxu0 %v318
      %892 = vmatprep.subr.mxu0 %v325
      %893 = vmatpush1.msra.mxu0 %v324
      %894 = vmatprep.subr.mxu0 %v331
      %895 = vmatpush1.msra.mxu0 %v330
      %896 = vmatprep.subr.mxu0 %v337
      %897 = vmatpush1.msra.mxu0 %v336
      %898 = vmatprep.subr.mxu0 %v343
      %899 = vmatpush1.msra.mxu0 %v342
      %900 = vmatprep.subr.mxu0 %v349
      %901 = vmatpush1.msra.mxu0 %v348
      %902 = vmatprep.subr.mxu0 %v355
      %903 = vmatpush1.msra.mxu0 %v354
      %904 = vmatprep.subr.mxu0 %v361
      %905 = vmatpush1.msra.mxu0 %v360
      %906 = vmatprep.subr.mxu0 %v367
      %907 = vmatpush1.msra.mxu0 %v366
      %908 = vmatprep.subr.mxu0 %v373
      %909 = vmatpush1.msra.mxu0 %v372
      %910 = vmatprep.subr.mxu0 %v379
      %911 = vmatpush1.msra.mxu0 %v378
      %912 = vmatprep.subr.mxu0 %v385
      %913 = vmatpush1.msra.mxu0 %v384
      %914 = vmatprep.subr.mxu0 %v391
      %915 = vmatpush1.msra.mxu0 %v390
      %916 = vmatprep.subr.mxu0 %v397
      %917 = vmatpush1.msra.mxu0 %v396
      %918 = vmatprep.subr.mxu0 %v403
      %919 = vmatpush1.msra.mxu0 %v402
      %920 = vmatprep.subr.mxu0 %v409
      %921 = vmatpush1.msra.mxu0 %v408
      %922 = vmatprep.subr.mxu0 %v415
      %923 = vmatpush1.msra.mxu0 %v414
      %924 = vmatprep.subr.mxu0 %v421
      %925 = vmatpush1.msra.mxu0 %v420
      %926 = vmatprep.subr.mxu0 %v427
      %927 = vmatpush1.msra.mxu0 %v426
      %928 = vmatprep.subr.mxu0 %v433
      %929 = vmatpush1.msra.mxu0 %v432
      %930 = vmatprep.subr.mxu0 %v439
      %931 = vmatpush1.msra.mxu0 %v438
      %932 = vmatprep.mubr.f32.mxu0 %v723
      %933 = vmatmul.mubr.f32.gmra.mrb[0].mxu0 %v722
      %v934 = vpop.f32.mrb[0].mxu0
      %v935 = vadd.f32 0.0, %v934
      %v936 = vpop.f32.mrb[0].mxu0
      %v937 = vadd.f32 0.0, %v936
      %938 = vdwg.mxu0
      %s939 = scalar_lea.vmem %s228, 48
      %v940 = vld [vmem:[%s939] sm:$0xff]
      %v941 = vld [vmem:[%s939 + $0x8] sm:$0xff]
      %v942 = vld [vmem:[%s939 + $0x10] sm:$0xff]
      %v943 = vld [vmem:[%s939 + $0x18] sm:$0xff]
      %v944 = vld [vmem:[%s939 + $0x20] sm:$0xff]
      %v945 = vld [vmem:[%s939 + $0x28] sm:$0xff]
      %v946 = vadd.f32 %v940, %v793
      %v947 = vadd.f32 %v941, %v795
      %v948 = vadd.f32 %v942, %v864
      %v949 = vadd.f32 %v943, %v866
      %v950 = vxor.u32 %v946, 2147483648
      %v951 = vxor.u32 %v947, 2147483648
      %v952 = vxor.u32 %v948, 2147483648
      %v953 = vxor.u32 %v949, 2147483648
      %v954 = vmul.f32 %v950, 1.442695
      %v955 = vpow.pop %v954
      %v956 = vmul.f32 %v951, 1.442695
      %v957 = vpow.pop %v956
      %v958 = vmul.f32 %v952, 1.442695
      %v959 = vpow.pop %v958
      %v960 = vmul.f32 %v953, 1.442695
      %v961 = vpow.pop %v960
      %v962 = vadd.f32 %v955, 1.0
      %v963 = vadd.f32 %v957, 1.0
      %v964 = vadd.f32 %v959, 1.0
      %v965 = vadd.f32 %v961, 1.0
      %v966 = vrcp.pop %v962
      %v967 = vmul.f32 1.0, %v966
      %v968 = vrcp.pop %v963
      %v969 = vmul.f32 1.0, %v968
      %v970 = vrcp.pop %v964
      %v971 = vmul.f32 1.0, %v970
      %v972 = vrcp.pop %v965
      %v973 = vmul.f32 1.0, %v972
      %v974 = vadd.f32 %v935, %v445
      %v975 = vadd.f32 %v937, %v449
      %v976 = vmul.f32 %v967, %v974
      %v977 = vmul.f32 %v969, %v975
      %v978 = vadd.f32 %v944, %v976
      %v979 = vadd.f32 %v945, %v977
      %v980 = vtanh.pop %v978
      %v981 = vtanh.pop %v979
      %v982 = vsub.f32 1.0, %v971
      %v983 = vsub.f32 1.0, %v973
      %v984 = vmul.f32 %v982, %v980
      %v985 = vmul.f32 %v983, %v981
      %v986 = vmul.f32 %v971, %v722
      %v987 = vmul.f32 %v973, %v723
      %v988 = vadd.f32 %v984, %v986
      %v989 = vadd.f32 %v985, %v987
      %s990 = sadd.s32 %s717, 1
      %p991 = scmp.lt.s32.totalorder %s990, 10
      %s992 = scalar_select %p991, 1, 0
      %v993 = vstv %s992
      %vm994 = vcmp.eq.s32.totalorder %v993, 1
      %v995 = vsel %vm994, %v988, %v722
      %v996 = vsel %vm994, %v989, %v723
      %s997 = scalar_lea.vmem %s234, 8
      %998 = vst [vmem:[%s997] sm:$0xff] %v995
      %s999 = scalar_lea.vmem %s240, 8
      %1000 = vst [vmem:[%s999] sm:$0xff] %v996
      %1001 = vmatprep.subr.mxu0 %v249
      %1002 = vmatpush1.msra.mxu0 %v248
      %1003 = vmatprep.subr.mxu0 %v255
      %1004 = vmatpush1.msra.mxu0 %v254
      %1005 = vmatprep.subr.mxu0 %v261
      %1006 = vmatpush1.msra.mxu0 %v260
      %1007 = vmatprep.subr.mxu0 %v267
      %1008 = vmatpush1.msra.mxu0 %v266
      %1009 = vmatprep.subr.mxu0 %v273
      %1010 = vmatpush1.msra.mxu0 %v272
      %1011 = vmatprep.subr.mxu0 %v279
      %1012 = vmatpush1.msra.mxu0 %v278
      %1013 = vmatprep.subr.mxu0 %v285
      %1014 = vmatpush1.msra.mxu0 %v284
      %1015 = vmatprep.subr.mxu0 %v291
      %1016 = vmatpush1.msra.mxu0 %v290
      %1017 = vmatprep.subr.mxu0 %v297
      %1018 = vmatpush1.msra.mxu0 %v296
      %1019 = vmatprep.subr.mxu0 %v303
      %1020 = vmatpush1.msra.mxu0 %v302
      %1021 = vmatprep.subr.mxu0 %v309
      %1022 = vmatpush1.msra.mxu0 %v308
      %1023 = vmatprep.subr.mxu0 %v315
      %1024 = vmatpush1.msra.mxu0 %v314
      %1025 = vmatprep.subr.mxu0 %v321
      %1026 = vmatpush1.msra.mxu0 %v320
      %1027 = vmatprep.subr.mxu0 %v327
      %1028 = vmatpush1.msra.mxu0 %v326
      %1029 = vmatprep.subr.mxu0 %v333
      %1030 = vmatpush1.msra.mxu0 %v332
      %1031 = vmatprep.subr.mxu0 %v339
      %1032 = vmatpush1.msra.mxu0 %v338
      %1033 = vmatprep.subr.mxu0 %v345
      %1034 = vmatpush1.msra.mxu0 %v344
      %1035 = vmatprep.subr.mxu0 %v351
      %1036 = vmatpush1.msra.mxu0 %v350
      %1037 = vmatprep.subr.mxu0 %v357
      %1038 = vmatpush1.msra.mxu0 %v356
      %1039 = vmatprep.subr.mxu0 %v363
      %1040 = vmatpush1.msra.mxu0 %v362
      %1041 = vmatprep.subr.mxu0 %v369
      %1042 = vmatpush1.msra.mxu0 %v368
      %1043 = vmatprep.subr.mxu0 %v375
      %1044 = vmatpush1.msra.mxu0 %v374
      %1045 = vmatprep.subr.mxu0 %v381
      %1046 = vmatpush1.msra.mxu0 %v380
      %1047 = vmatprep.subr.mxu0 %v387
      %1048 = vmatpush1.msra.mxu0 %v386
      %1049 = vmatprep.subr.mxu0 %v393
      %1050 = vmatpush1.msra.mxu0 %v392
      %1051 = vmatprep.subr.mxu0 %v399
      %1052 = vmatpush1.msra.mxu0 %v398
      %1053 = vmatprep.subr.mxu0 %v405
      %1054 = vmatpush1.msra.mxu0 %v404
      %1055 = vmatprep.subr.mxu0 %v411
      %1056 = vmatpush1.msra.mxu0 %v410
      %1057 = vmatprep.subr.mxu0 %v417
      %1058 = vmatpush1.msra.mxu0 %v416
      %1059 = vmatprep.subr.mxu0 %v423
      %1060 = vmatpush1.msra.mxu0 %v422
      %1061 = vmatprep.subr.mxu0 %v429
      %1062 = vmatpush1.msra.mxu0 %v428
      %1063 = vmatprep.subr.mxu0 %v435
      %1064 = vmatpush1.msra.mxu0 %v434
      %1065 = vmatprep.mubr.f32.mxu0 %v996
      %1066 = vmatmul.mubr.f32.gmra.mrb[0].mxu0 %v995
      %v1067 = vpop.f32.mrb[0].mxu0
      %v1068 = vadd.f32 0.0, %v1067
      %v1069 = vpop.f32.mrb[0].mxu0
      %v1070 = vadd.f32 0.0, %v1069
      %1071 = vdwg.mxu0
      %1072 = vmatprep.subr.mxu0 %v251
      %1073 = vmatpush1.msra.mxu0 %v250
      %1074 = vmatprep.subr.mxu0 %v257
      %1075 = vmatpush1.msra.mxu0 %v256
      %1076 = vmatprep.subr.mxu0 %v263
      %1077 = vmatpush1.msra.mxu0 %v262
      %1078 = vmatprep.subr.mxu0 %v269
      %1079 = vmatpush1.msra.mxu0 %v268
      %1080 = vmatprep.subr.mxu0 %v275
      %1081 = vmatpush1.msra.mxu0 %v274
      %1082 = vmatprep.subr.mxu0 %v281
      %1083 = vmatpush1.msra.mxu0 %v280
      %1084 = vmatprep.subr.mxu0 %v287
      %1085 = vmatpush1.msra.mxu0 %v286
      %1086 = vmatprep.subr.mxu0 %v293
      %1087 = vmatpush1.msra.mxu0 %v292
      %1088 = vmatprep.subr.mxu0 %v299
      %1089 = vmatpush1.msra.mxu0 %v298
      %1090 = vmatprep.subr.mxu0 %v305
      %1091 = vmatpush1.msra.mxu0 %v304
      %1092 = vmatprep.subr.mxu0 %v311
      %1093 = vmatpush1.msra.mxu0 %v310
      %1094 = vmatprep.subr.mxu0 %v317
      %1095 = vmatpush1.msra.mxu0 %v316
      %1096 = vmatprep.subr.mxu0 %v323
      %1097 = vmatpush1.msra.mxu0 %v322
      %1098 = vmatprep.subr.mxu0 %v329
      %1099 = vmatpush1.msra.mxu0 %v328
      %1100 = vmatprep.subr.mxu0 %v335
      %1101 = vmatpush1.msra.mxu0 %v334
      %1102 = vmatprep.subr.mxu0 %v341
      %1103 = vmatpush1.msra.mxu0 %v340
      %1104 = vmatprep.subr.mxu0 %v347
      %1105 = vmatpush1.msra.mxu0 %v346
      %1106 = vmatprep.subr.mxu0 %v353
      %1107 = vmatpush1.msra.mxu0 %v352
      %1108 = vmatprep.subr.mxu0 %v359
      %1109 = vmatpush1.msra.mxu0 %v358
      %1110 = vmatprep.subr.mxu0 %v365
      %1111 = vmatpush1.msra.mxu0 %v364
      %1112 = vmatprep.subr.mxu0 %v371
      %1113 = vmatpush1.msra.mxu0 %v370
      %1114 = vmatprep.subr.mxu0 %v377
      %1115 = vmatpush1.msra.mxu0 %v376
      %1116 = vmatprep.subr.mxu0 %v383
      %1117 = vmatpush1.msra.mxu0 %v382
      %1118 = vmatprep.subr.mxu0 %v389
      %1119 = vmatpush1.msra.mxu0 %v388
      %1120 = vmatprep.subr.mxu0 %v395
      %1121 = vmatpush1.msra.mxu0 %v394
      %1122 = vmatprep.subr.mxu0 %v401
      %1123 = vmatpush1.msra.mxu0 %v400
      %1124 = vmatprep.subr.mxu0 %v407
      %1125 = vmatpush1.msra.mxu0 %v406
      %1126 = vmatprep.subr.mxu0 %v413
      %1127 = vmatpush1.msra.mxu0 %v412
      %1128 = vmatprep.subr.mxu0 %v419
      %1129 = vmatpush1.msra.mxu0 %v418
      %1130 = vmatprep.subr.mxu0 %v425
      %1131 = vmatpush1.msra.mxu0 %v424
      %1132 = vmatprep.subr.mxu0 %v431
      %1133 = vmatpush1.msra.mxu0 %v430
      %1134 = vmatprep.subr.mxu0 %v437
      %1135 = vmatpush1.msra.mxu0 %v436
      %1136 = vmatprep.mubr.f32.mxu0 %v996
      %1137 = vmatmul.mubr.f32.gmra.mrb[0].mxu0 %v995
      %v1138 = vpop.f32.mrb[0].mxu0
      %v1139 = vadd.f32 0.0, %v1138
      %v1140 = vpop.f32.mrb[0].mxu0
      %v1141 = vadd.f32 0.0, %v1140
      %1142 = vdwg.mxu0
      %1143 = vmatprep.subr.mxu0 %v253
      %1144 = vmatpush1.msra.mxu0 %v252
      %1145 = vmatprep.subr.mxu0 %v259
      %1146 = vmatpush1.msra.mxu0 %v258
      %1147 = vmatprep.subr.mxu0 %v265
      %1148 = vmatpush1.msra.mxu0 %v264
      %1149 = vmatprep.subr.mxu0 %v271
      %1150 = vmatpush1.msra.mxu0 %v270
      %1151 = vmatprep.subr.mxu0 %v277
      %1152 = vmatpush1.msra.mxu0 %v276
      %1153 = vmatprep.subr.mxu0 %v283
      %1154 = vmatpush1.msra.mxu0 %v282
      %1155 = vmatprep.subr.mxu0 %v289
      %1156 = vmatpush1.msra.mxu0 %v288
      %1157 = vmatprep.subr.mxu0 %v295
      %1158 = vmatpush1.msra.mxu0 %v294
      %1159 = vmatprep.subr.mxu0 %v301
      %1160 = vmatpush1.msra.mxu0 %v300
      %1161 = vmatprep.subr.mxu0 %v307
      %1162 = vmatpush1.msra.mxu0 %v306
      %1163 = vmatprep.subr.mxu0 %v313
      %1164 = vmatpush1.msra.mxu0 %v312
      %1165 = vmatprep.subr.mxu0 %v319
      %1166 = vmatpush1.msra.mxu0 %v318
      %1167 = vmatprep.subr.mxu0 %v325
      %1168 = vmatpush1.msra.mxu0 %v324
      %1169 = vmatprep.subr.mxu0 %v331
      %1170 = vmatpush1.msra.mxu0 %v330
      %1171 = vmatprep.subr.mxu0 %v337
      %1172 = vmatpush1.msra.mxu0 %v336
      %1173 = vmatprep.subr.mxu0 %v343
      %1174 = vmatpush1.msra.mxu0 %v342
      %1175 = vmatprep.subr.mxu0 %v349
      %1176 = vmatpush1.msra.mxu0 %v348
      %1177 = vmatprep.subr.mxu0 %v355
      %1178 = vmatpush1.msra.mxu0 %v354
      %1179 = vmatprep.subr.mxu0 %v361
      %1180 = vmatpush1.msra.mxu0 %v360
      %1181 = vmatprep.subr.mxu0 %v367
      %1182 = vmatpush1.msra.mxu0 %v366
      %1183 = vmatprep.subr.mxu0 %v373
      %1184 = vmatpush1.msra.mxu0 %v372
      %1185 = vmatprep.subr.mxu0 %v379
      %1186 = vmatpush1.msra.mxu0 %v378
      %1187 = vmatprep.subr.mxu0 %v385
      %1188 = vmatpush1.msra.mxu0 %v384
      %1189 = vmatprep.subr.mxu0 %v391
      %1190 = vmatpush1.msra.mxu0 %v390
      %1191 = vmatprep.subr.mxu0 %v397
      %1192 = vmatpush1.msra.mxu0 %v396
      %1193 = vmatprep.subr.mxu0 %v403
      %1194 = vmatpush1.msra.mxu0 %v402
      %1195 = vmatprep.subr.mxu0 %v409
      %1196 = vmatpush1.msra.mxu0 %v408
      %1197 = vmatprep.subr.mxu0 %v415
      %1198 = vmatpush1.msra.mxu0 %v414
      %1199 = vmatprep.subr.mxu0 %v421
      %1200 = vmatpush1.msra.mxu0 %v420
      %1201 = vmatprep.subr.mxu0 %v427
      %1202 = vmatpush1.msra.mxu0 %v426
      %1203 = vmatprep.subr.mxu0 %v433
      %1204 = vmatpush1.msra.mxu0 %v432
      %1205 = vmatprep.subr.mxu0 %v439
      %1206 = vmatpush1.msra.mxu0 %v438
      %1207 = vmatprep.mubr.f32.mxu0 %v996
      %1208 = vmatmul.mubr.f32.gmra.mrb[0].mxu0 %v995
      %v1209 = vpop.f32.mrb[0].mxu0
      %v1210 = vadd.f32 0.0, %v1209
      %v1211 = vpop.f32.mrb[0].mxu0
      %v1212 = vadd.f32 0.0, %v1211
      %1213 = vdwg.mxu0
      %s1214 = scalar_lea.vmem %s228, 96
      %v1215 = vld [vmem:[%s1214] sm:$0xff]
      %v1216 = vld [vmem:[%s1214 + $0x8] sm:$0xff]
      %v1217 = vld [vmem:[%s1214 + $0x10] sm:$0xff]
      %v1218 = vld [vmem:[%s1214 + $0x18] sm:$0xff]
      %v1219 = vld [vmem:[%s1214 + $0x20] sm:$0xff]
      %v1220 = vld [vmem:[%s1214 + $0x28] sm:$0xff]
      %v1221 = vadd.f32 %v1215, %v1068
      %v1222 = vadd.f32 %v1216, %v1070
      %v1223 = vadd.f32 %v1217, %v1139
      %v1224 = vadd.f32 %v1218, %v1141
      %v1225 = vxor.u32 %v1221, 2147483648
      %v1226 = vxor.u32 %v1222, 2147483648
      %v1227 = vxor.u32 %v1223, 2147483648
      %v1228 = vxor.u32 %v1224, 2147483648
      %v1229 = vmul.f32 %v1225, 1.442695
      %v1230 = vpow.pop %v1229
      %v1231 = vmul.f32 %v1226, 1.442695
      %v1232 = vpow.pop %v1231
      %v1233 = vmul.f32 %v1227, 1.442695
      %v1234 = vpow.pop %v1233
      %v1235 = vmul.f32 %v1228, 1.442695
      %v1236 = vpow.pop %v1235
      %v1237 = vadd.f32 %v1230, 1.0
      %v1238 = vadd.f32 %v1232, 1.0
      %v1239 = vadd.f32 %v1234, 1.0
      %v1240 = vadd.f32 %v1236, 1.0
      %v1241 = vrcp.pop %v1237
      %v1242 = vmul.f32 1.0, %v1241
      %v1243 = vrcp.pop %v1238
      %v1244 = vmul.f32 1.0, %v1243
      %v1245 = vrcp.pop %v1239
      %v1246 = vmul.f32 1.0, %v1245
      %v1247 = vrcp.pop %v1240
      %v1248 = vmul.f32 1.0, %v1247
      %v1249 = vadd.f32 %v1210, %v445
      %v1250 = vadd.f32 %v1212, %v449
      %v1251 = vmul.f32 %v1242, %v1249
      %v1252 = vmul.f32 %v1244, %v1250
      %v1253 = vadd.f32 %v1219, %v1251
      %v1254 = vadd.f32 %v1220, %v1252
      %v1255 = vtanh.pop %v1253
      %v1256 = vtanh.pop %v1254
      %v1257 = vsub.f32 1.0, %v1246
      %v1258 = vsub.f32 1.0, %v1248
      %v1259 = vmul.f32 %v1257, %v1255
      %v1260 = vmul.f32 %v1258, %v1256
      %v1261 = vmul.f32 %v1246, %v995
      %v1262 = vmul.f32 %v1248, %v996
      %v1263 = vadd.f32 %v1259, %v1261
      %v1264 = vadd.f32 %v1260, %v1262
      %s1265 = sadd.s32 %s717, 2
      %p1266 = scmp.lt.s32.totalorder %s1265, 10
      %s1267 = scalar_select %p1266, 1, 0
      %v1268 = vstv %s1267
      %vm1269 = vcmp.eq.s32.totalorder %v1268, 1
      %v1270 = vsel %vm1269, %v1263, %v995
      %v1271 = vsel %vm1269, %v1264, %v996
      %s1272 = scalar_lea.vmem %s234, 16
      %1273 = vst [vmem:[%s1272] sm:$0xff] %v1270
      %s1274 = scalar_lea.vmem %s240, 16
      %1275 = vst [vmem:[%s1274] sm:$0xff] %v1271
      %1276 = vmatprep.subr.mxu0 %v249
      %1277 = vmatpush1.msra.mxu0 %v248
      %1278 = vmatprep.subr.mxu0 %v255
      %1279 = vmatpush1.msra.mxu0 %v254
      %1280 = vmatprep.subr.mxu0 %v261
      %1281 = vmatpush1.msra.mxu0 %v260
      %1282 = vmatprep.subr.mxu0 %v267
      %1283 = vmatpush1.msra.mxu0 %v266
      %1284 = vmatprep.subr.mxu0 %v273
      %1285 = vmatpush1.msra.mxu0 %v272
      %1286 = vmatprep.subr.mxu0 %v279
      %1287 = vmatpush1.msra.mxu0 %v278
      %1288 = vmatprep.subr.mxu0 %v285
      %1289 = vmatpush1.msra.mxu0 %v284
      %1290 = vmatprep.subr.mxu0 %v291
      %1291 = vmatpush1.msra.mxu0 %v290
      %1292 = vmatprep.subr.mxu0 %v297
      %1293 = vmatpush1.msra.mxu0 %v296
      %1294 = vmatprep.subr.mxu0 %v303
      %1295 = vmatpush1.msra.mxu0 %v302
      %1296 = vmatprep.subr.mxu0 %v309
      %1297 = vmatpush1.msra.mxu0 %v308
      %1298 = vmatprep.subr.mxu0 %v315
      %1299 = vmatpush1.msra.mxu0 %v314
      %1300 = vmatprep.subr.mxu0 %v321
      %1301 = vmatpush1.msra.mxu0 %v320
      %1302 = vmatprep.subr.mxu0 %v327
      %1303 = vmatpush1.msra.mxu0 %v326
      %1304 = vmatprep.subr.mxu0 %v333
      %1305 = vmatpush1.msra.mxu0 %v332
      %1306 = vmatprep.subr.mxu0 %v339
      %1307 = vmatpush1.msra.mxu0 %v338
      %1308 = vmatprep.subr.mxu0 %v345
      %1309 = vmatpush1.msra.mxu0 %v344
      %1310 = vmatprep.subr.mxu0 %v351
      %1311 = vmatpush1.msra.mxu0 %v350
      %1312 = vmatprep.subr.mxu0 %v357
      %1313 = vmatpush1.msra.mxu0 %v356
      %1314 = vmatprep.subr.mxu0 %v363
      %1315 = vmatpush1.msra.mxu0 %v362
      %1316 = vmatprep.subr.mxu0 %v369
      %1317 = vmatpush1.msra.mxu0 %v368
      %1318 = vmatprep.subr.mxu0 %v375
      %1319 = vmatpush1.msra.mxu0 %v374
      %1320 = vmatprep.subr.mxu0 %v381
      %1321 = vmatpush1.msra.mxu0 %v380
      %1322 = vmatprep.subr.mxu0 %v387
      %1323 = vmatpush1.msra.mxu0 %v386
      %1324 = vmatprep.subr.mxu0 %v393
      %1325 = vmatpush1.msra.mxu0 %v392
      %1326 = vmatprep.subr.mxu0 %v399
      %1327 = vmatpush1.msra.mxu0 %v398
      %1328 = vmatprep.subr.mxu0 %v405
      %1329 = vmatpush1.msra.mxu0 %v404
      %1330 = vmatprep.subr.mxu0 %v411
      %1331 = vmatpush1.msra.mxu0 %v410
      %1332 = vmatprep.subr.mxu0 %v417
      %1333 = vmatpush1.msra.mxu0 %v416
      %1334 = vmatprep.subr.mxu0 %v423
      %1335 = vmatpush1.msra.mxu0 %v422
      %1336 = vmatprep.subr.mxu0 %v429
      %1337 = vmatpush1.msra.mxu0 %v428
      %1338 = vmatprep.subr.mxu0 %v435
      %1339 = vmatpush1.msra.mxu0 %v434
      %1340 = vmatprep.mubr.f32.mxu0 %v1271
      %1341 = vmatmul.mubr.f32.gmra.mrb[0].mxu0 %v1270
      %v1342 = vpop.f32.mrb[0].mxu0
      %v1343 = vadd.f32 0.0, %v1342
      %v1344 = vpop.f32.mrb[0].mxu0
      %v1345 = vadd.f32 0.0, %v1344
      %1346 = vdwg.mxu0
      %1347 = vmatprep.subr.mxu0 %v251
      %1348 = vmatpush1.msra.mxu0 %v250
      %1349 = vmatprep.subr.mxu0 %v257
      %1350 = vmatpush1.msra.mxu0 %v256
      %1351 = vmatprep.subr.mxu0 %v263
      %1352 = vmatpush1.msra.mxu0 %v262
      %1353 = vmatprep.subr.mxu0 %v269
      %1354 = vmatpush1.msra.mxu0 %v268
      %1355 = vmatprep.subr.mxu0 %v275
      %1356 = vmatpush1.msra.mxu0 %v274
      %1357 = vmatprep.subr.mxu0 %v281
      %1358 = vmatpush1.msra.mxu0 %v280
      %1359 = vmatprep.subr.mxu0 %v287
      %1360 = vmatpush1.msra.mxu0 %v286
      %1361 = vmatprep.subr.mxu0 %v293
      %1362 = vmatpush1.msra.mxu0 %v292
      %1363 = vmatprep.subr.mxu0 %v299
      %1364 = vmatpush1.msra.mxu0 %v298
      %1365 = vmatprep.subr.mxu0 %v305
      %1366 = vmatpush1.msra.mxu0 %v304
      %1367 = vmatprep.subr.mxu0 %v311
      %1368 = vmatpush1.msra.mxu0 %v310
      %1369 = vmatprep.subr.mxu0 %v317
      %1370 = vmatpush1.msra.mxu0 %v316
      %1371 = vmatprep.subr.mxu0 %v323
      %1372 = vmatpush1.msra.mxu0 %v322
      %1373 = vmatprep.subr.mxu0 %v329
      %1374 = vmatpush1.msra.mxu0 %v328
      %1375 = vmatprep.subr.mxu0 %v335
      %1376 = vmatpush1.msra.mxu0 %v334
      %1377 = vmatprep.subr.mxu0 %v341
      %1378 = vmatpush1.msra.mxu0 %v340
      %1379 = vmatprep.subr.mxu0 %v347
      %1380 = vmatpush1.msra.mxu0 %v346
      %1381 = vmatprep.subr.mxu0 %v353
      %1382 = vmatpush1.msra.mxu0 %v352
      %1383 = vmatprep.subr.mxu0 %v359
      %1384 = vmatpush1.msra.mxu0 %v358
      %1385 = vmatprep.subr.mxu0 %v365
      %1386 = vmatpush1.msra.mxu0 %v364
      %1387 = vmatprep.subr.mxu0 %v371
      %1388 = vmatpush1.msra.mxu0 %v370
      %1389 = vmatprep.subr.mxu0 %v377
      %1390 = vmatpush1.msra.mxu0 %v376
      %1391 = vmatprep.subr.mxu0 %v383
      %1392 = vmatpush1.msra.mxu0 %v382
      %1393 = vmatprep.subr.mxu0 %v389
      %1394 = vmatpush1.msra.mxu0 %v388
      %1395 = vmatprep.subr.mxu0 %v395
      %1396 = vmatpush1.msra.mxu0 %v394
      %1397 = vmatprep.subr.mxu0 %v401
      %1398 = vmatpush1.msra.mxu0 %v400
      %1399 = vmatprep.subr.mxu0 %v407
      %1400 = vmatpush1.msra.mxu0 %v406
      %1401 = vmatprep.subr.mxu0 %v413
      %1402 = vmatpush1.msra.mxu0 %v412
      %1403 = vmatprep.subr.mxu0 %v419
      %1404 = vmatpush1.msra.mxu0 %v418
      %1405 = vmatprep.subr.mxu0 %v425
      %1406 = vmatpush1.msra.mxu0 %v424
      %1407 = vmatprep.subr.mxu0 %v431
      %1408 = vmatpush1.msra.mxu0 %v430
      %1409 = vmatprep.subr.mxu0 %v437
      %1410 = vmatpush1.msra.mxu0 %v436
      %1411 = vmatprep.mubr.f32.mxu0 %v1271
      %1412 = vmatmul.mubr.f32.gmra.mrb[0].mxu0 %v1270
      %v1413 = vpop.f32.mrb[0].mxu0
      %v1414 = vadd.f32 0.0, %v1413
      %v1415 = vpop.f32.mrb[0].mxu0
      %v1416 = vadd.f32 0.0, %v1415
      %1417 = vdwg.mxu0
      %1418 = vmatprep.subr.mxu0 %v253
      %1419 = vmatpush1.msra.mxu0 %v252
      %1420 = vmatprep.subr.mxu0 %v259
      %1421 = vmatpush1.msra.mxu0 %v258
      %1422 = vmatprep.subr.mxu0 %v265
      %1423 = vmatpush1.msra.mxu0 %v264
      %1424 = vmatprep.subr.mxu0 %v271
      %1425 = vmatpush1.msra.mxu0 %v270
      %1426 = vmatprep.subr.mxu0 %v277
      %1427 = vmatpush1.msra.mxu0 %v276
      %1428 = vmatprep.subr.mxu0 %v283
      %1429 = vmatpush1.msra.mxu0 %v282
      %1430 = vmatprep.subr.mxu0 %v289
      %1431 = vmatpush1.msra.mxu0 %v288
      %1432 = vmatprep.subr.mxu0 %v295
      %1433 = vmatpush1.msra.mxu0 %v294
      %1434 = vmatprep.subr.mxu0 %v301
      %1435 = vmatpush1.msra.mxu0 %v300
      %1436 = vmatprep.subr.mxu0 %v307
      %1437 = vmatpush1.msra.mxu0 %v306
      %1438 = vmatprep.subr.mxu0 %v313
      %1439 = vmatpush1.msra.mxu0 %v312
      %1440 = vmatprep.subr.mxu0 %v319
      %1441 = vmatpush1.msra.mxu0 %v318
      %1442 = vmatprep.subr.mxu0 %v325
      %1443 = vmatpush1.msra.mxu0 %v324
      %1444 = vmatprep.subr.mxu0 %v331
      %1445 = vmatpush1.msra.mxu0 %v330
      %1446 = vmatprep.subr.mxu0 %v337
      %1447 = vmatpush1.msra.mxu0 %v336
      %1448 = vmatprep.subr.mxu0 %v343
      %1449 = vmatpush1.msra.mxu0 %v342
      %1450 = vmatprep.subr.mxu0 %v349
      %1451 = vmatpush1.msra.mxu0 %v348
      %1452 = vmatprep.subr.mxu0 %v355
      %1453 = vmatpush1.msra.mxu0 %v354
      %1454 = vmatprep.subr.mxu0 %v361
      %1455 = vmatpush1.msra.mxu0 %v360
      %1456 = vmatprep.subr.mxu0 %v367
      %1457 = vmatpush1.msra.mxu0 %v366
      %1458 = vmatprep.subr.mxu0 %v373
      %1459 = vmatpush1.msra.mxu0 %v372
      %1460 = vmatprep.subr.mxu0 %v379
      %1461 = vmatpush1.msra.mxu0 %v378
      %1462 = vmatprep.subr.mxu0 %v385
      %1463 = vmatpush1.msra.mxu0 %v384
      %1464 = vmatprep.subr.mxu0 %v391
      %1465 = vmatpush1.msra.mxu0 %v390
      %1466 = vmatprep.subr.mxu0 %v397
      %1467 = vmatpush1.msra.mxu0 %v396
      %1468 = vmatprep.subr.mxu0 %v403
      %1469 = vmatpush1.msra.mxu0 %v402
      %1470 = vmatprep.subr.mxu0 %v409
      %1471 = vmatpush1.msra.mxu0 %v408
      %1472 = vmatprep.subr.mxu0 %v415
      %1473 = vmatpush1.msra.mxu0 %v414
      %1474 = vmatprep.subr.mxu0 %v421
      %1475 = vmatpush1.msra.mxu0 %v420
      %1476 = vmatprep.subr.mxu0 %v427
      %1477 = vmatpush1.msra.mxu0 %v426
      %1478 = vmatprep.subr.mxu0 %v433
      %1479 = vmatpush1.msra.mxu0 %v432
      %1480 = vmatprep.subr.mxu0 %v439
      %1481 = vmatpush1.msra.mxu0 %v438
      %1482 = vmatprep.mubr.f32.mxu0 %v1271
      %1483 = vmatmul.mubr.f32.gmra.mrb[0].mxu0 %v1270
      %v1484 = vpop.f32.mrb[0].mxu0
      %v1485 = vadd.f32 0.0, %v1484
      %v1486 = vpop.f32.mrb[0].mxu0
      %v1487 = vadd.f32 0.0, %v1486
      %1488 = vdwg.mxu0
      %s1489 = scalar_lea.vmem %s228, 144
      %v1490 = vld [vmem:[%s1489] sm:$0xff]
      %v1491 = vld [vmem:[%s1489 + $0x8] sm:$0xff]
      %v1492 = vld [vmem:[%s1489 + $0x10] sm:$0xff]
      %v1493 = vld [vmem:[%s1489 + $0x18] sm:$0xff]
      %v1494 = vld [vmem:[%s1489 + $0x20] sm:$0xff]
      %v1495 = vld [vmem:[%s1489 + $0x28] sm:$0xff]
      %v1496 = vadd.f32 %v1490, %v1343
      %v1497 = vadd.f32 %v1491, %v1345
      %v1498 = vadd.f32 %v1492, %v1414
      %v1499 = vadd.f32 %v1493, %v1416
      %v1500 = vxor.u32 %v1496, 2147483648
      %v1501 = vxor.u32 %v1497, 2147483648
      %v1502 = vxor.u32 %v1498, 2147483648
      %v1503 = vxor.u32 %v1499, 2147483648
      %v1504 = vmul.f32 %v1500, 1.442695
      %v1505 = vpow.pop %v1504
      %v1506 = vmul.f32 %v1501, 1.442695
      %v1507 = vpow.pop %v1506
      %v1508 = vmul.f32 %v1502, 1.442695
      %v1509 = vpow.pop %v1508
      %v1510 = vmul.f32 %v1503, 1.442695
      %v1511 = vpow.pop %v1510
      %v1512 = vadd.f32 %v1505, 1.0
      %v1513 = vadd.f32 %v1507, 1.0
      %v1514 = vadd.f32 %v1509, 1.0
      %v1515 = vadd.f32 %v1511, 1.0
      %v1516 = vrcp.pop %v1512
      %v1517 = vmul.f32 1.0, %v1516
      %v1518 = vrcp.pop %v1513
      %v1519 = vmul.f32 1.0, %v1518
      %v1520 = vrcp.pop %v1514
      %v1521 = vmul.f32 1.0, %v1520
      %v1522 = vrcp.pop %v1515
      %v1523 = vmul.f32 1.0, %v1522
      %v1524 = vadd.f32 %v1485, %v445
      %v1525 = vadd.f32 %v1487, %v449
      %v1526 = vmul.f32 %v1517, %v1524
      %v1527 = vmul.f32 %v1519, %v1525
      %v1528 = vadd.f32 %v1494, %v1526
      %v1529 = vadd.f32 %v1495, %v1527
      %v1530 = vtanh.pop %v1528
      %v1531 = vtanh.pop %v1529
      %v1532 = vsub.f32 1.0, %v1521
      %v1533 = vsub.f32 1.0, %v1523
      %v1534 = vmul.f32 %v1532, %v1530
      %v1535 = vmul.f32 %v1533, %v1531
      %v1536 = vmul.f32 %v1521, %v1270
      %v1537 = vmul.f32 %v1523, %v1271
      %v1538 = vadd.f32 %v1534, %v1536
      %v1539 = vadd.f32 %v1535, %v1537
      %s1540 = sadd.s32 %s717, 3
      %p1541 = scmp.lt.s32.totalorder %s1540, 10
      %s1542 = scalar_select %p1541, 1, 0
      %v1543 = vstv %s1542
      %vm1544 = vcmp.eq.s32.totalorder %v1543, 1
      %v1545 = vsel %vm1544, %v1538, %v1270
      %v1546 = vsel %vm1544, %v1539, %v1271
      %s1547 = scalar_lea.vmem %s234, 24
      %1548 = vst [vmem:[%s1547] sm:$0xff] %v1545
      %s1549 = scalar_lea.vmem %s240, 24
      %1550 = vst [vmem:[%s1549] sm:$0xff] %v1546
      %1551 = vst [vmem:[#allocation2] sm:$0xff] %v1545
      %1552 = vst [vmem:[#allocation2 + $0x8] sm:$0xff] %v1546
      %p1553 = scmp.eq.s32.totalorder %s17, 2
      // Predicated region
      $region37: #{encoder_forward.1} parent=31 // pred_check
        %p1554 = pneg %p1553
      $region38: #{encoder_forward.1} parent=31 // pred_check_branch
        %1556 = sbr.rel (%p1554) target = $region40
      $region39: #{encoder_forward.1} parent=31 // pred_region
        %1557 = vst [vmem:[%s5] sm:$0xff] %v1545
        %1558 = vst [vmem:[%s5 + $0x8] sm:$0xff] %v1546
      $region40: #{encoder_forward.1} parent=31 // pred_fallthru
        _
      %s1559 = smul.u32 4, %s17
      %p1560 = scmp.lt.s32.totalorder %s1559, 11
      %s1561 = scalar_select %p1560, %s1559, 11
      %s1562 = smul.addr %s1561, 8
      %s1563 = scalar_lea.vmem %s3, %s1562
      %s1564 = smul.u32 4, %s17
      %p1565 = scmp.lt.s32.totalorder %s1564, 11
      %s1566 = scalar_select %p1565, %s1564, 11
      %s1567 = smul.addr %s1566, 8
      %s1568 = scalar_lea.vmem %s4, %s1567
      // Predicated region
      $region41: #{encoder_forward.1} parent=31 // pred_check
        %p1569 = pneg %p103
      $region42: #{encoder_forward.1} parent=31 // pred_check_branch
        %1571 = sbr.rel (%p1569) target = $region44
      $region43: #{encoder_forward.1} parent=31 // pred_region
        %s1572 = smul.u32 4, %s17
      $region44: #{encoder_forward.1} parent=31 // pred_fallthru
        _
      // Predicated region
      $region45: #{encoder_forward.1} parent=31 // pred_check
        %p1573 = pneg %p129
      $region46: #{encoder_forward.1} parent=31 // pred_check_branch
        %1575 = sbr.rel (%p1573) target = $region48
      $region47: #{encoder_forward.1} parent=31 // pred_region
        %s1576 = smul.u32 4, %s17
      $region48: #{encoder_forward.1} parent=31 // pred_fallthru
        _
      // Predicated region
      $region49: #{encoder_forward.1} parent=31 // pred_check
        %p1577 = pneg %p150
      $region50: #{encoder_forward.1} parent=31 // pred_check_branch
        %1579 = sbr.rel (%p1577) target = $region52
      $region51: #{encoder_forward.1} parent=31 // pred_region
        _
      $region52: #{encoder_forward.1} parent=31 // pred_fallthru
        _
      // Predicated region
      $region53: #{encoder_forward.1} parent=31 // pred_check
        %p1580 = pneg %p150
      $region54: #{encoder_forward.1} parent=31 // pred_check_branch
        %1582 = sbr.rel (%p1580) target = $region56
      $region55: #{encoder_forward.1} parent=31 // pred_region
        _
      $region56: #{encoder_forward.1} parent=31 // pred_fallthru
        _
    $region32: #{encoder_forward.1} parent=5 // pred_fallthru
      _
    %p1583 = scmp.le.s32.totalorder 2, %s12
    // Predicated region
    $region57: #{encoder_forward.1} parent=5 // pred_check
      %p1584 = pneg %p1583
    $region58: #{encoder_forward.1} parent=5 // pred_check_branch
      %1586 = sbr.rel (%p1584) target = $region60
    $region59: #{encoder_forward.1} parent=5 // pred_region
      %s1587 = ssub.s32 %s12, 2
      // Predicated region
      $region61: #{encoder_forward.1} parent=59 // pred_check
        %p1588 = pneg %p109
      $region62: #{encoder_forward.1} parent=59 // pred_check_branch
        %1590 = sbr.rel (%p1588) target = $region64
      $region63: #{encoder_forward.1} parent=59 // pred_region
        %s1591 = smul.u32 4, %s18
        %p1592 = scmp.lt.s32.totalorder %s1591, 11
        %s1593 = scalar_select %p1592, %s1591, 11
        %s1594 = smul.addr %s1593, 8
        %s1595 = scalar_lea.vmem %s3, %s1594
      $region64: #{encoder_forward.1} parent=59 // pred_fallthru
        _
      // Predicated region
      $region65: #{encoder_forward.1} parent=59 // pred_check
        %p1596 = pneg %p135
      $region66: #{encoder_forward.1} parent=59 // pred_check_branch
        %1598 = sbr.rel (%p1596) target = $region68
      $region67: #{encoder_forward.1} parent=59 // pred_region
        %s1599 = smul.u32 4, %s18
        %p1600 = scmp.lt.s32.totalorder %s1599, 11
        %s1601 = scalar_select %p1600, %s1599, 11
        %s1602 = smul.addr %s1601, 8
        %s1603 = scalar_lea.vmem %s4, %s1602
      $region68: #{encoder_forward.1} parent=59 // pred_fallthru
        _
    $region60: #{encoder_forward.1} parent=5 // pred_fallthru
      _
  $region6: #{encoder_forward.1} parent=0 // loop_footer
    %s16 = sadd.s32 1, %s12
  $region7: #{encoder_forward.1} parent=0 // loop_footer_branch
    %11 = sbr.rel target = $region3
  $region8: #{encoder_forward.1} parent=0 // loop_exit
    _

</llo_original>
